<compile_context>
chip_gen: v6e
topology: v6e:2x2x1
jax: 0.10.0
libtpu: 0.0.40
codegen_flags: <defaults>
</compile_context>

<pallas_src>
import functools

import jax
import jax.numpy as jnp
from jax.experimental import pallas as pl
from jax.experimental.pallas import tpu as pltpu

PARAM_DTYPE = jnp.bfloat16   # weight storage
ACT_DTYPE = jnp.bfloat16     # sequence activations between kernels
_LANE = 128
_SUBLANE = 8


def _round_up(x, m):
    return (x + m - 1) // m * m


@functools.lru_cache(maxsize=None)
def _tpu_generation():
    """Best-effort TPU generation (5, 6, 7, ...); defaults to 6 if unknown."""
    try:
        kind = jax.devices()[0].device_kind.lower()
    except Exception:
        return 6
    for g in (7, 6, 5, 4):
        if "v{}".format(g) in kind:
            return g
    return 6


# ----------------------------------------------------------------------------
# Probe whether this JAX/Mosaic build accepts single-buffered BlockSpecs
# (pipeline_mode=pl.Buffered(1)); if not, fall back to default double buffering.
# ----------------------------------------------------------------------------
def _probe_buffered_one():
    try:
        def k(a_ref, b_ref, o_ref):
            o_ref[...] = a_ref[...] + b_ref[...]
        a = jnp.ones((8, 128), jnp.float32)
        b = jnp.ones((16, 128), jnp.float32)
        out = pl.pallas_call(
            k,
            out_shape=jax.ShapeDtypeStruct((16, 128), jnp.float32),
            grid=(2,),
            in_specs=[
                pl.BlockSpec((8, 128), lambda i: (0, 0),
                             pipeline_mode=pl.Buffered(1)),
                pl.BlockSpec((8, 128), lambda i: (i, 0)),
            ],
            out_specs=pl.BlockSpec((8, 128), lambda i: (i, 0)),
        )(a, b)
        jax.block_until_ready(out)
        return True
    except Exception:
        return False


_BUFFERED_ONE_OK = _probe_buffered_one()


def _single_buffered_spec(block_shape, index_map):
    """Single-buffer a resident (constant index_map) block to save VMEM."""
    if _BUFFERED_ONE_OK:
        return pl.BlockSpec(block_shape, index_map,
                            pipeline_mode=pl.Buffered(1))
    return pl.BlockSpec(block_shape, index_map)


# ----------------------------------------------------------------------------
# Tiled matmul + bias:  out = x @ w + b   (f32 accumulation in VMEM scratch)
# Used for the decoder.
# ----------------------------------------------------------------------------
def _matmul_bias_kernel(x_ref, w_ref, b_ref, o_ref, acc_ref):
    k = pl.program_id(2)

    @pl.when(k == 0)
    def _():
        acc_ref[...] = jnp.zeros_like(acc_ref)

    acc_ref[...] += jnp.dot(x_ref[...], w_ref[...],
                            preferred_element_type=jnp.float32)

    @pl.when(k == pl.num_programs(2) - 1)
    def _():
        o_ref[...] = (acc_ref[...] + b_ref[...].astype(jnp.float32)
                      ).astype(o_ref.dtype)


def matmul_bias(x, w, b, *, out_dtype, tm_cap=512, tn_cap=1024, tk_cap=1024,
                vmem_limit=64 * 1024 * 1024):
    """x: (M, K), w: (K, N), b: (1, N) -> (M, N) in out_dtype."""
    M, K = x.shape
    K2, N = w.shape
    assert K == K2 and b.shape == (1, N)

    tm = min(tm_cap, _round_up(M, _SUBLANE))
    tn = min(tn_cap, _round_up(N, _LANE))
    tk = min(tk_cap, _round_up(K, _LANE))
    Mp, Np, Kp = _round_up(M, tm), _round_up(N, tn), _round_up(K, tk)

    xp = x if (Mp == M and Kp == K) else (
        jnp.zeros((Mp, Kp), x.dtype).at[:M, :K].set(x))
    wp = w if (Kp == K and Np == N) else (
        jnp.zeros((Kp, Np), w.dtype).at[:K, :N].set(w))
    bp = b if Np == N else jnp.zeros((1, Np), b.dtype).at[:, :N].set(b)

    out = pl.pallas_call(
        _matmul_bias_kernel,
        out_shape=jax.ShapeDtypeStruct((Mp, Np), out_dtype),
        grid=(Mp // tm, Np // tn, Kp // tk),
        in_specs=[
            pl.BlockSpec((tm, tk), lambda i, j, k: (i, k)),
            pl.BlockSpec((tk, tn), lambda i, j, k: (k, j)),
            pl.BlockSpec((1, tn), lambda i, j, k: (0, j)),
        ],
        out_specs=pl.BlockSpec((tm, tn), lambda i, j, k: (i, j)),
        scratch_shapes=[pltpu.VMEM((tm, tn), jnp.float32)],
        compiler_params=pltpu.CompilerParams(
            dimension_semantics=("parallel", "parallel", "arbitrary"),
            vmem_limit_bytes=vmem_limit),
    )(xp, wp, bp)
    if Mp != M or Np != N:
        out = out[:M, :N]
    return out


# ----------------------------------------------------------------------------
# Fused GRU scan kernel.
#   Per grid step (one batch tile x one time block):
#     g = x_block @ Wi + (b_ih + b_hh[r,z])        one big MXU matmul
#     for each timestep in the block (serial):
#       hh = h @ Wh
#       r = sig(g_r + hh_r); z = sig(g_z + hh_z)
#       n = tanh(g_n + r * (hh_n + b_hn));  h' = n + z*(h - n)
#   Hidden state carried across time blocks in a VMEM scratch (f32).
# ----------------------------------------------------------------------------
def _gru_scan_kernel(x_ref, h0_ref, wi_ref, bi_ref, wh_ref, bhn_ref,
                     out_ref, hN_ref, h_scr, g_scr, *,
                     hid, seq_len, block_t, block_b, chunk, compute_dtype):
    tb = pl.program_id(1)
    last_tb = pl.num_programs(1) - 1
    tail_masked = (seq_len % block_t) != 0          # static python bool

    @pl.when(tb == 0)
    def _():
        h_scr[...] = h0_ref[...]

    # Fused input projection for the whole time block (MXU-friendly M dim).
    xb = x_ref[...].reshape(block_t * block_b, x_ref.shape[-1])
    g = jnp.dot(xb, wi_ref[...], preferred_element_type=jnp.float32)
    g = g + bi_ref[...].astype(jnp.float32)          # b_ih + folded b_hh[r,z]
    g_scr[...] = g.reshape(block_t, block_b, 3 * hid)

    wh = wh_ref[...]                                 # (Hp, 3Hp) bf16, resident
    # n-gate hidden bias, pre-broadcast ONCE (JAX does not CSE broadcasts).
    bhn = jnp.broadcast_to(bhn_ref[...].astype(jnp.float32), (block_b, hid))

    if tail_masked:
        # Zero padded tail rows so no stale VMEM is written back to HBM.
        @pl.when(tb == last_tb)
        def _():
            out_ref[...] = jnp.zeros(out_ref.shape, out_ref.dtype)

    def step(i):
        h = h_scr[...]                                            # (Bb, Hp) f32
        gi = g_scr[i]                                             # (Bb, 3Hp) f32
        hh = jnp.dot(h.astype(wh.dtype), wh,
                     preferred_element_type=jnp.float32)          # (Bb, 3Hp) f32
        pre_rz = (gi[:, :2 * hid] + hh[:, :2 * hid]).astype(compute_dtype)
        r = jax.nn.sigmoid(pre_rz[:, :hid])
        z = jax.nn.sigmoid(pre_rz[:, hid:])
        hn = (hh[:, 2 * hid:] + bhn).astype(compute_dtype)
        n = jnp.tanh(gi[:, 2 * hid:].astype(compute_dtype) + r * hn)
        nf = n.astype(jnp.float32)
        h_new = nf + z.astype(jnp.float32) * (h - nf)             # (1-z)n + zh
        out_ref[i] = h_new.astype(out_ref.dtype)
        h_scr[...] = h_new

    # Short scf.for over chunks with a small static unroll inside: the steps
    # are serially dependent through h, so a 16x unroll only buys spill traffic.
    @pl.loop(0, block_t // chunk)
    def _chunked(c):
        for j in range(chunk):                                    # static unroll
            i = c * chunk + j
            if tail_masked:
                @pl.when(tb * block_t + i < seq_len)
                def _(i=i):
                    step(i)
            else:
                step(i)

    @pl.when(tb == last_tb)
    def _():
        hN_ref[...] = h_scr[...]


def _gru_vmem_bytes(block_t, block_b, din_p, hp):
    """Approximate VMEM footprint of one gru_scan invocation."""
    g3 = 3 * hp
    wbuf = 1 if _BUFFERED_ONE_OK else 2
    total = 0
    total += 2 * block_t * block_b * din_p * 2            # x blocks (bf16, 2-buf)
    total += 2 * block_t * block_b * hp * 2               # out blocks (bf16, 2-buf)
    total += wbuf * (din_p * g3 + hp * g3) * 2            # Wi, Wh (bf16)
    total += wbuf * (g3 + hp) * 4                         # biases (f32, tiny)
    total += 2 * 2 * block_b * hp * 4                     # h0 in + hN out (f32)
    total += block_b * hp * 4                             # h scratch (f32)
    total += block_t * block_b * g3 * 4                   # g scratch (f32)
    total += 6 * block_b * g3 * 4                         # per-step temporaries
    return total


def _choose_block_b(bp, hp, gen):
    if gen >= 7:
        # 2 TensorCores per chip: prefer >=2 batch tiles so both run the scan,
        # unless the recurrence is MXU-bound (large H) where 256-row fill wins.
        if hp >= 1024 or bp < 16:
            return min(bp, 256)
        return min(256, max(_SUBLANE, _round_up(bp // 2, _SUBLANE)))
    if gen >= 6:
        # 256x256 MXU: use 256 rows when the batch supports it.
        return min(bp, 256 if bp >= 256 else 128)
    return min(bp, 128)      # v5e: 128-row MXU; keep vreg/VMEM pressure low


def gru_scan(x, h0, wi, bi, wh, bhn, *, seq_len, block_b, block_t,
             compute_dtype, vmem_limit):
    """x: (Tp, Bp, Din) bf16, h0: (Bp, Hp) f32, wi: (Din, 3Hp), wh: (Hp, 3Hp),
    bi: (1, 3Hp) f32 (b_ih with b_hh[r,z] folded in), bhn: (1, Hp) f32.
    Returns (out (Tp, Bp, Hp) bf16, hN (Bp, Hp) f32)."""
    Tp, Bp, Din = x.shape
    Hp, G3 = wh.shape
    chunk = min(block_t, 4)
    kernel = functools.partial(
        _gru_scan_kernel, hid=Hp, seq_len=seq_len, block_t=block_t,
        block_b=block_b, chunk=chunk, compute_dtype=compute_dtype)

    out, hN = pl.pallas_call(
        kernel,
        out_shape=(jax.ShapeDtypeStruct((Tp, Bp, Hp), ACT_DTYPE),
                   jax.ShapeDtypeStruct((Bp, Hp), jnp.float32)),
        grid=(Bp // block_b, Tp // block_t),
        in_specs=[
            pl.BlockSpec((block_t, block_b, Din), lambda b, t: (t, b, 0)),   # x
            pl.BlockSpec((block_b, Hp), lambda b, t: (b, 0)),                # h0
            _single_buffered_spec((Din, G3), lambda b, t: (0, 0)),           # Wi
            _single_buffered_spec((1, G3), lambda b, t: (0, 0)),             # bi
            _single_buffered_spec((Hp, G3), lambda b, t: (0, 0)),            # Wh
            _single_buffered_spec((1, Hp), lambda b, t: (0, 0)),             # bhn
        ],
        out_specs=[
            pl.BlockSpec((block_t, block_b, Hp), lambda b, t: (t, b, 0)),    # seq
            pl.BlockSpec((block_b, Hp), lambda b, t: (b, 0)),                # hN
        ],
        scratch_shapes=[pltpu.VMEM((block_b, Hp), jnp.float32),              # h carry
                        pltpu.VMEM((block_t, block_b, G3), jnp.float32)],    # g block
        compiler_params=pltpu.CompilerParams(
            dimension_semantics=("parallel", "arbitrary"),   # batch ||, time serial
            vmem_limit_bytes=vmem_limit),
    )(x, h0, wi, bi, wh, bhn)
    return out, hN


# ----------------------------------------------------------------------------
# Parameter packing (PyTorch layout -> lane-padded fused-gate layout)
# ----------------------------------------------------------------------------
def _pack_gate_matrix(w, H, Hp, din, din_p):
    """(3H, din) row-stacked [r;z;n] -> (din_p, 3*Hp), gate blocks along lanes."""
    wg = w.reshape(3, H, din)
    out = jnp.zeros((din_p, 3 * Hp), jnp.float32)
    for g in range(3):
        out = out.at[:din, g * Hp:g * Hp + H].set(wg[g].T)
    return out


def _pack_gate_bias(b, H, Hp):
    bg = b.reshape(3, H)
    out = jnp.zeros((1, 3 * Hp), jnp.float32)
    for g in range(3):
        out = out.at[0, g * Hp:g * Hp + H].set(bg[g])
    return out


def init_params(key, ntoken, ninp, nhid, nlayers):
    initrange = 0.1
    ninp_p = _round_up(ninp, _LANE)
    nhid_p = _round_up(nhid, _LANE)
    keys = jax.random.split(key, 2 + 4 * nlayers)

    params = {}
    enc = jax.random.uniform(keys[0], (ntoken, ninp), minval=-initrange,
                             maxval=initrange, dtype=jnp.float32)
    # Row `ntoken` is a reserved all-zero padding row: padded tokens gather it
    # directly, so no second padding pass over the layer-0 activation slab.
    params["enc_w"] = (jnp.zeros((ntoken + 1, ninp_p), jnp.float32)
                       .at[:ntoken, :ninp].set(enc).astype(PARAM_DTYPE))

    dec = jax.random.uniform(keys[1], (ntoken, nhid), minval=-initrange,
                             maxval=initrange, dtype=jnp.float32)
    params["dec_w_t"] = (jnp.zeros((nhid_p, ntoken), jnp.float32)
                         .at[:nhid, :].set(dec.T).astype(PARAM_DTYPE))
    params["dec_b"] = jnp.zeros((1, ntoken), jnp.float32)

    stdv = 1.0 / float(nhid) ** 0.5
    params["gru"] = []
    for l in range(nlayers):
        din = ninp if l == 0 else nhid
        din_p = ninp_p if l == 0 else nhid_p
        k = keys[2 + 4 * l: 6 + 4 * l]
        w_ih = jax.random.uniform(k[0], (3 * nhid, din), minval=-stdv,
                                  maxval=stdv, dtype=jnp.float32)
        w_hh = jax.random.uniform(k[1], (3 * nhid, nhid), minval=-stdv,
                                  maxval=stdv, dtype=jnp.float32)
        b_ih = jax.random.uniform(k[2], (3 * nhid,), minval=-stdv, maxval=stdv,
                                  dtype=jnp.float32)
        b_hh = jax.random.uniform(k[3], (3 * nhid,), minval=-stdv, maxval=stdv,
                                  dtype=jnp.float32)
        wi = _pack_gate_matrix(w_ih, nhid, nhid_p, din, din_p).astype(PARAM_DTYPE)
        wh = _pack_gate_matrix(w_hh, nhid, nhid_p, nhid, nhid_p).astype(PARAM_DTYPE)
        bi = _pack_gate_bias(b_ih, nhid, nhid_p)     # f32
        bhh = _pack_gate_bias(b_hh, nhid, nhid_p)    # f32
        # Fold the purely-additive r/z parts of b_hh into the hoisted bias;
        # only the n-gate hidden bias stays inside the recurrence.
        bi = bi.at[:, :2 * nhid_p].add(bhh[:, :2 * nhid_p])
        bhn = bhh[:, 2 * nhid_p:]                    # (1, nhid_p)
        params["gru"].append((wi, wh, bi, bhn))
    return params


# ----------------------------------------------------------------------------
# Forward pass (Embedding -> GRU stack -> Linear decoder)
# ----------------------------------------------------------------------------
def _forward(params, tokens, hidden):
    """tokens: (T, B) int32, hidden: (nlayers, B, H) f32.
    Returns (decoded (T, B, ntoken) f32, hidden' (nlayers, B, H) f32)."""
    T, B = tokens.shape
    nlayers, _, H = hidden.shape
    Hp = params["gru"][0][1].shape[0]           # wh: (Hp, 3Hp)
    ninp_p = params["enc_w"].shape[1]
    ntoken = params["dec_b"].shape[-1]

    gen = _tpu_generation()
    # bf16 gate math on v6e/v7x (bf16 VPU/EUP); f32 on v5e.
    compute_dtype = jnp.bfloat16 if gen >= 6 else jnp.float32
    vmem_cap = (56 if gen >= 7 else 96) * 1024 * 1024
    budget = int(vmem_cap * 0.85)

    # Batch tiling (MXU-row fill on v6e/v7x, >=2 tiles for v7x's 2 TCs).
    Bp0 = _round_up(B, _SUBLANE)
    block_b = _choose_block_b(Bp0, Hp, gen)
    Bp = _round_up(Bp0, block_b)

    # Time-block size from the VMEM budget (v7x has 64 MiB physical VMEM).
    max_din = max(ninp_p, Hp)
    block_t = 16
    while block_t > 1 and block_t >= 2 * T:
        block_t //= 2
    while block_t > 1 and _gru_vmem_bytes(block_t, block_b, max_din, Hp) > budget:
        block_t //= 2
    Tp = _round_up(T, block_t)

    # Encoder: pad tokens with the reserved zero-embedding row so the gather
    # emits the padded (Tp, Bp, ninp_p) slab directly.  Dropout: eval identity.
    pad_id = params["enc_w"].shape[0] - 1
    tok_p = jnp.full((Tp, Bp), pad_id, tokens.dtype).at[:T, :B].set(tokens)
    x = jnp.take(params["enc_w"], tok_p, axis=0)             # (Tp, Bp, ninp_p) bf16

    hid0 = jnp.zeros((nlayers, Bp, Hp), jnp.float32).at[:, :B, :H].set(hidden)

    new_hidden = []
    for l, (wi, wh, bi, bhn) in enumerate(params["gru"]):
        x, hN = gru_scan(x, hid0[l], wi, bi, wh, bhn,
                         seq_len=T, block_b=block_b, block_t=block_t,
                         compute_dtype=compute_dtype, vmem_limit=vmem_cap)
        new_hidden.append(hN)
        # TODO(synk): training-mode inter-layer / output dropout (p=0.5) not implemented.

    hidden_out = jnp.stack(new_hidden, axis=0)[:, :B, :H]

    # Decoder: only the valid T*B rows (skip padded batch rows); f32 logits.
    flat = x[:T, :B, :].reshape(T * B, Hp)
    logits = matmul_bias(flat, params["dec_w_t"], params["dec_b"],
                         out_dtype=jnp.float32, vmem_limit=vmem_cap)
    decoded = logits.reshape(T, B, ntoken)
    return decoded, hidden_out


rnn_model_forward = jax.jit(_forward)


# ----------------------------------------------------------------------------
# Plain-JAX f32 reference (same packed/padded weights) for a sanity check.
# ----------------------------------------------------------------------------
def _reference_forward(params, tokens, hidden):
    T, B = tokens.shape
    nlayers, _, H = hidden.shape
    Hp = params["gru"][0][1].shape[0]
    x = jnp.take(params["enc_w"].astype(jnp.float32), tokens, axis=0)
    hs = []
    for l, (wi, wh, bi, bhn) in enumerate(params["gru"]):
        wi32, wh32 = wi.astype(jnp.float32), wh.astype(jnp.float32)
        h = jnp.zeros((B, Hp), jnp.float32).at[:, :H].set(hidden[l])

        def step(h, xt, wi32=wi32, wh32=wh32, bi=bi, bhn=bhn):
            gi = xt @ wi32 + bi                      # b_ih + folded b_hh[r,z]
            gh = h @ wh32
            r = jax.nn.sigmoid(gi[:, :Hp] + gh[:, :Hp])
            z = jax.nn.sigmoid(gi[:, Hp:2 * Hp] + gh[:, Hp:2 * Hp])
            n = jnp.tanh(gi[:, 2 * Hp:] + r * (gh[:, 2 * Hp:] + bhn))
            h_new = n + z * (h - n)
            return h_new, h_new

        h, ys = jax.lax.scan(step, h, x)
        x = ys
        hs.append(h[:, :H])
    dec = (x.reshape(T * B, Hp) @ params["dec_w_t"].astype(jnp.float32)
           + params["dec_b"])
    return dec.reshape(T, B, -1), jnp.stack(hs, axis=0)


if __name__ == "__main__":
    ntoken, ninp, nhid, nlayers = 50, 32, 32, 2
    seq_len, batch = 8, 4

    key = jax.random.PRNGKey(0)
    k_params, k_tokens = jax.random.split(key)

    params = init_params(k_params, ntoken, ninp, nhid, nlayers)
    tokens = jax.random.randint(k_tokens, (seq_len, batch), 0, ntoken,
                                dtype=jnp.int32)
    hidden0 = jnp.zeros((nlayers, batch, nhid), jnp.float32)   # init_hidden

    decoded, hidden = rnn_model_forward(params, tokens, hidden0)
    jax.block_until_ready((decoded, hidden))

    assert decoded.shape == (seq_len, batch, ntoken)
    assert hidden.shape == (nlayers, batch, nhid)

    ref_decoded, ref_hidden = _reference_forward(params, tokens, hidden0)
    err_d = float(jnp.max(jnp.abs(decoded - ref_decoded)))
    err_h = float(jnp.max(jnp.abs(hidden - ref_hidden)))
    assert err_d < 5e-2 and err_h < 5e-2, (err_d, err_h)

    print("KERNEL_OK")
</pallas_src>

<mosaic_0001>
module attributes {stable_mosaic.version = 11 : i64} {
  func.func @k(%arg0: i32, %arg1: memref<8x128xf32, #tpu.memory_space<vmem>>, %arg2: memref<8x128xf32, #tpu.memory_space<vmem>>, %arg3: memref<8x128xf32, #tpu.memory_space<vmem>>) attributes {dimension_semantics = [#tpu.dimension_semantics<arbitrary>], iteration_bounds = array<i64: 2>, scalar_prefetch = 0 : i64, scratch_operands = 0 : i64, tpu.core_type = #tpu.core_type<tc>, window_params = [{pipeline_mode = #tpu.pipeline_mode<synchronous>, transform_indices = @transform_0, window_bounds = array<i64: 8, 128>}, {transform_indices = @transform_1, window_bounds = array<i64: 8, 128>}, {transform_indices = @transform_2, window_bounds = array<i64: 8, 128>}]} {
    %c0 = arith.constant 0 : index
    %c0_0 = arith.constant 0 : index
    %0 = vector.load %arg1[%c0, %c0_0] : memref<8x128xf32, #tpu.memory_space<vmem>>, vector<8x128xf32>
    %c0_1 = arith.constant 0 : index
    %c0_2 = arith.constant 0 : index
    %1 = vector.load %arg2[%c0_1, %c0_2] : memref<8x128xf32, #tpu.memory_space<vmem>>, vector<8x128xf32>
    %2 = arith.addf %0, %1 : vector<8x128xf32>
    %c0_3 = arith.constant 0 : index
    %c0_4 = arith.constant 0 : index
    %3 = vector.load %arg3[%c0_3, %c0_4] : memref<8x128xf32, #tpu.memory_space<vmem>>, vector<8x128xf32>
    tpu.vector_store %arg3[%c0_3, %c0_4], %2 {strides = array<i32>} : memref<8x128xf32, #tpu.memory_space<vmem>>, vector<8x128xf32>,
    return
  }
  func.func @transform_0(%arg0: i32) -> (i32, i32) {
    %c0_i32 = arith.constant 0 : i32
    %c0_i32_0 = arith.constant 0 : i32
    %c0_i32_1 = arith.constant 0 : i32
    return %c0_i32, %c0_i32_0 : i32, i32
  }
  func.func @transform_1(%arg0: i32) -> (i32, i32) {
    %c0_i32 = arith.constant 0 : i32
    %c0_i32_0 = arith.constant 0 : i32
    return %arg0, %c0_i32 : i32, i32
  }
  func.func @transform_2(%arg0: i32) -> (i32, i32) {
    %c0_i32 = arith.constant 0 : i32
    %c0_i32_0 = arith.constant 0 : i32
    return %arg0, %c0_i32 : i32, i32
  }
}

module attributes {stable_mosaic.version = 11 : i64} {
  func.func @_gru_scan_kernel(%arg0: i32, %arg1: i32, %arg2: memref<8x8x128xbf16, #tpu.memory_space<vmem>>, %arg3: memref<8x128xf32, #tpu.memory_space<vmem>>, %arg4: memref<128x384xbf16, #tpu.memory_space<vmem>>, %arg5: memref<1x384xf32, #tpu.memory_space<vmem>>, %arg6: memref<128x384xbf16, #tpu.memory_space<vmem>>, %arg7: memref<1x128xf32, #tpu.memory_space<vmem>>, %arg8: memref<8x8x128xbf16, #tpu.memory_space<vmem>>, %arg9: memref<8x128xf32, #tpu.memory_space<vmem>>, %arg10: memref<8x128xf32, #tpu.memory_space<vmem>>, %arg11: memref<8x8x384xf32, #tpu.memory_space<vmem>>) attributes {dimension_semantics = [#tpu.dimension_semantics<parallel>, #tpu.dimension_semantics<arbitrary>], iteration_bounds = array<i64: 1, 1>, scalar_prefetch = 0 : i64, scratch_operands = 2 : i64, tpu.core_type = #tpu.core_type<tc>, window_params = [{transform_indices = @transform_0, window_bounds = array<i64: 8, 8, 128>}, {transform_indices = @transform_1, window_bounds = array<i64: 8, 128>}, {pipeline_mode = #tpu.pipeline_mode<synchronous>, transform_indices = @transform_2, window_bounds = array<i64: 128, 384>}, {pipeline_mode = #tpu.pipeline_mode<synchronous>, transform_indices = @transform_3, window_bounds = array<i64: 1, 384>}, {pipeline_mode = #tpu.pipeline_mode<synchronous>, transform_indices = @transform_4, window_bounds = array<i64: 128, 384>}, {pipeline_mode = #tpu.pipeline_mode<synchronous>, transform_indices = @transform_5, window_bounds = array<i64: 1, 128>}, {transform_indices = @transform_6, window_bounds = array<i64: 8, 8, 128>}, {transform_indices = @transform_7, window_bounds = array<i64: 8, 128>}]} {
    %c0_i32 = arith.constant 0 : i32
    %0 = arith.cmpi eq, %arg1, %c0_i32 : i32
    %1 = arith.extui %0 : i1 to i32
    %c0_i32_0 = arith.constant 0 : i32
    %2 = arith.cmpi ne, %1, %c0_i32_0 : i32
    scf.if %2 {
      %c0_18 = arith.constant 0 : index
      %c0_19 = arith.constant 0 : index
      %20 = vector.load %arg3[%c0_18, %c0_19] : memref<8x128xf32, #tpu.memory_space<vmem>>, vector<8x128xf32>
      %c0_20 = arith.constant 0 : index
      %c0_21 = arith.constant 0 : index
      %21 = vector.load %arg10[%c0_20, %c0_21] : memref<8x128xf32, #tpu.memory_space<vmem>>, vector<8x128xf32>
      tpu.vector_store %arg10[%c0_20, %c0_21], %20 {strides = array<i32>} : memref<8x128xf32, #tpu.memory_space<vmem>>, vector<8x128xf32>,
    } else {
    }
    %c0 = arith.constant 0 : index
    %c0_1 = arith.constant 0 : index
    %c0_2 = arith.constant 0 : index
    %3 = vector.load %arg2[%c0, %c0_1, %c0_2] : memref<8x8x128xbf16, #tpu.memory_space<vmem>>, vector<8x8x128xbf16>
    %4 = vector.shape_cast %3 : vector<8x8x128xbf16> to vector<64x128xbf16>
    %c0_3 = arith.constant 0 : index
    %c0_4 = arith.constant 0 : index
    %5 = vector.load %arg4[%c0_3, %c0_4] : memref<128x384xbf16, #tpu.memory_space<vmem>>, vector<128x384xbf16>
    %cst = arith.constant dense<0.000000e+00> : vector<64x384xf32>
    %6 = tpu.matmul %4, %5, %cst {dimension_numbers = #tpu.dot_dimension_numbers<[1], [0], [0], [1], [0, 0, 1, 1], [], []>} : vector<64x128xbf16>, vector<128x384xbf16>, vector<64x384xf32> -> vector<64x384xf32>
    %c0_5 = arith.constant 0 : index
    %c0_6 = arith.constant 0 : index
    %7 = vector.load %arg5[%c0_5, %c0_6] : memref<1x384xf32, #tpu.memory_space<vmem>>, vector<1x384xf32>
    %8 = vector.broadcast %7 : vector<1x384xf32> to vector<64x384xf32>
    %9 = arith.addf %6, %8 : vector<64x384xf32>
    %10 = vector.shape_cast %9 : vector<64x384xf32> to vector<8x8x384xf32>
    %c0_7 = arith.constant 0 : index
    %c0_8 = arith.constant 0 : index
    %c0_9 = arith.constant 0 : index
    %11 = vector.load %arg11[%c0_7, %c0_8, %c0_9] : memref<8x8x384xf32, #tpu.memory_space<vmem>>, vector<8x8x384xf32>
    tpu.vector_store %arg11[%c0_7, %c0_8, %c0_9], %10 {strides = array<i32>} : memref<8x8x384xf32, #tpu.memory_space<vmem>>, vector<8x8x384xf32>,
    %c0_10 = arith.constant 0 : index
    %c0_11 = arith.constant 0 : index
    %12 = vector.load %arg6[%c0_10, %c0_11] : memref<128x384xbf16, #tpu.memory_space<vmem>>, vector<128x384xbf16>
    %c0_12 = arith.constant 0 : index
    %c0_13 = arith.constant 0 : index
    %13 = vector.load %arg7[%c0_12, %c0_13] : memref<1x128xf32, #tpu.memory_space<vmem>>, vector<1x128xf32>
    %14 = vector.shape_cast %13 : vector<1x128xf32> to vector<1x128xf32>
    %15 = vector.broadcast %14 : vector<1x128xf32> to vector<8x128xf32>
    %c0_i32_14 = arith.constant 0 : i32
    %c2_i32 = arith.constant 2 : i32
    %16 = arith.addi %c0_i32_14, %c2_i32 : i32
    %c1_i32 = arith.constant 1 : i32
    scf.for %arg12 = %c0_i32_14 to %16 step %c1_i32  : i32 {
      %c1_i32_18 = arith.constant 1 : i32
      %20 = arith.muli %arg12, %c1_i32_18 : i32
      %c0_i32_19 = arith.constant 0 : i32
      %21 = arith.addi %c0_i32_19, %20 : i32
      %c4_i32 = arith.constant 4 : i32
      %22 = arith.muli %21, %c4_i32 : i32
      %c0_i32_20 = arith.constant 0 : i32
      %23 = arith.addi %22, %c0_i32_20 : i32
      %c0_21 = arith.constant 0 : index
      %c0_22 = arith.constant 0 : index
      %24 = vector.load %arg10[%c0_21, %c0_22] : memref<8x128xf32, #tpu.memory_space<vmem>>, vector<8x128xf32>
      %25 = arith.index_cast %23 : i32 to index
      %c0_23 = arith.constant 0 : index
      %c0_24 = arith.constant 0 : index
      %26 = vector.load %arg11[%25, %c0_23, %c0_24] : memref<8x8x384xf32, #tpu.memory_space<vmem>>, vector<1x8x384xf32>
      %27 = vector.shape_cast %26 : vector<1x8x384xf32> to vector<8x384xf32>
      %28 = arith.truncf %24 : vector<8x128xf32> to vector<8x128xbf16>
      %cst_25 = arith.constant dense<0.000000e+00> : vector<8x384xf32>
      %29 = tpu.matmul %28, %12, %cst_25 {dimension_numbers = #tpu.dot_dimension_numbers<[1], [0], [0], [1], [0, 0, 1, 1], [], []>} : vector<8x128xbf16>, vector<128x384xbf16>, vector<8x384xf32> -> vector<8x384xf32>
      %30 = vector.extract_strided_slice %27 {offsets = [0, 0], sizes = [8, 256], strides = [1, 1]} : vector<8x384xf32> to vector<8x256xf32>
      %31 = vector.extract_strided_slice %29 {offsets = [0, 0], sizes = [8, 256], strides = [1, 1]} : vector<8x384xf32> to vector<8x256xf32>
      %32 = arith.addf %30, %31 : vector<8x256xf32>
      %33 = arith.truncf %32 : vector<8x256xf32> to vector<8x256xbf16>
      %34 = vector.extract_strided_slice %33 {offsets = [0, 0], sizes = [8, 128], strides = [1, 1]} : vector<8x256xbf16> to vector<8x128xbf16>
      %35 = arith.negf %34 : vector<8x128xbf16>
      %36 = math.exp %35 : vector<8x128xbf16>
      %cst_26 = arith.constant 1.000000e+00 : bf16
      %37 = vector.broadcast %cst_26 : bf16 to vector<8x128xbf16>
      %38 = arith.addf %37, %36 : vector<8x128xbf16>
      %39 = arith.divf %37, %38 : vector<8x128xbf16>
      %40 = vector.extract_strided_slice %33 {offsets = [0, 128], sizes = [8, 128], strides = [1, 1]} : vector<8x256xbf16> to vector<8x128xbf16>
      %41 = arith.negf %40 : vector<8x128xbf16>
      %42 = math.exp %41 : vector<8x128xbf16>
      %cst_27 = arith.constant 1.000000e+00 : bf16
      %43 = vector.broadcast %cst_27 : bf16 to vector<8x128xbf16>
      %44 = arith.addf %43, %42 : vector<8x128xbf16>
      %45 = arith.divf %43, %44 : vector<8x128xbf16>
      %46 = vector.extract_strided_slice %29 {offsets = [0, 256], sizes = [8, 128], strides = [1, 1]} : vector<8x384xf32> to vector<8x128xf32>
      %47 = arith.addf %46, %15 : vector<8x128xf32>
      %48 = arith.truncf %47 : vector<8x128xf32> to vector<8x128xbf16>
      %49 = vector.extract_strided_slice %27 {offsets = [0, 256], sizes = [8, 128], strides = [1, 1]} : vector<8x384xf32> to vector<8x128xf32>
      %50 = arith.truncf %49 : vector<8x128xf32> to vector<8x128xbf16>
      %51 = arith.mulf %39, %48 : vector<8x128xbf16>
      %52 = arith.addf %50, %51 : vector<8x128xbf16>
      %53 = math.tanh %52 : vector<8x128xbf16>
      %54 = arith.extf %53 : vector<8x128xbf16> to vector<8x128xf32>
      %55 = arith.extf %45 : vector<8x128xbf16> to vector<8x128xf32>
      %56 = arith.subf %24, %54 : vector<8x128xf32>
      %57 = arith.mulf %55, %56 : vector<8x128xf32>
      %58 = arith.addf %54, %57 : vector<8x128xf32>
      %59 = arith.truncf %58 : vector<8x128xf32> to vector<8x128xbf16>
      %60 = arith.index_cast %23 : i32 to index
      %c0_28 = arith.constant 0 : index
      %c0_29 = arith.constant 0 : index
      %61 = vector.load %arg8[%60, %c0_28, %c0_29] : memref<8x8x128xbf16, #tpu.memory_space<vmem>>, vector<1x8x128xbf16>
      %62 = vector.shape_cast %61 : vector<1x8x128xbf16> to vector<8x128xbf16>
      %63 = vector.shape_cast %59 : vector<8x128xbf16> to vector<1x8x128xbf16>
      tpu.vector_store %arg8[%60, %c0_28, %c0_29], %63 {strides = array<i32>} : memref<8x8x128xbf16, #tpu.memory_space<vmem>>, vector<1x8x128xbf16>,
      %c0_30 = arith.constant 0 : index
      %c0_31 = arith.constant 0 : index
      %64 = vector.load %arg10[%c0_30, %c0_31] : memref<8x128xf32, #tpu.memory_space<vmem>>, vector<8x128xf32>
      tpu.vector_store %arg10[%c0_30, %c0_31], %58 {strides = array<i32>} : memref<8x128xf32, #tpu.memory_space<vmem>>, vector<8x128xf32>,
      %c4_i32_32 = arith.constant 4 : i32
      %65 = arith.muli %21, %c4_i32_32 : i32
      %c1_i32_33 = arith.constant 1 : i32
      %66 = arith.addi %65, %c1_i32_33 : i32
      %c0_34 = arith.constant 0 : index
      %c0_35 = arith.constant 0 : index
      %67 = vector.load %arg10[%c0_34, %c0_35] : memref<8x128xf32, #tpu.memory_space<vmem>>, vector<8x128xf32>
      %68 = arith.index_cast %66 : i32 to index
      %c0_36 = arith.constant 0 : index
      %c0_37 = arith.constant 0 : index
      %69 = vector.load %arg11[%68, %c0_36, %c0_37] : memref<8x8x384xf32, #tpu.memory_space<vmem>>, vector<1x8x384xf32>
      %70 = vector.shape_cast %69 : vector<1x8x384xf32> to vector<8x384xf32>
      %71 = arith.truncf %67 : vector<8x128xf32> to vector<8x128xbf16>
      %cst_38 = arith.constant dense<0.000000e+00> : vector<8x384xf32>
      %72 = tpu.matmul %71, %12, %cst_38 {dimension_numbers = #tpu.dot_dimension_numbers<[1], [0], [0], [1], [0, 0, 1, 1], [], []>} : vector<8x128xbf16>, vector<128x384xbf16>, vector<8x384xf32> -> vector<8x384xf32>
      %73 = vector.extract_strided_slice %70 {offsets = [0, 0], sizes = [8, 256], strides = [1, 1]} : vector<8x384xf32> to vector<8x256xf32>
      %74 = vector.extract_strided_slice %72 {offsets = [0, 0], sizes = [8, 256], strides = [1, 1]} : vector<8x384xf32> to vector<8x256xf32>
      %75 = arith.addf %73, %74 : vector<8x256xf32>
      %76 = arith.truncf %75 : vector<8x256xf32> to vector<8x256xbf16>
      %77 = vector.extract_strided_slice %76 {offsets = [0, 0], sizes = [8, 128], strides = [1, 1]} : vector<8x256xbf16> to vector<8x128xbf16>
      %78 = arith.negf %77 : vector<8x128xbf16>
      %79 = math.exp %78 : vector<8x128xbf16>
      %cst_39 = arith.constant 1.000000e+00 : bf16
      %80 = vector.broadcast %cst_39 : bf16 to vector<8x128xbf16>
      %81 = arith.addf %80, %79 : vector<8x128xbf16>
      %82 = arith.divf %80, %81 : vector<8x128xbf16>
      %83 = vector.extract_strided_slice %76 {offsets = [0, 128], sizes = [8, 128], strides = [1, 1]} : vector<8x256xbf16> to vector<8x128xbf16>
      %84 = arith.negf %83 : vector<8x128xbf16>
      %85 = math.exp %84 : vector<8x128xbf16>
      %cst_40 = arith.constant 1.000000e+00 : bf16
      %86 = vector.broadcast %cst_40 : bf16 to vector<8x128xbf16>
      %87 = arith.addf %86, %85 : vector<8x128xbf16>
      %88 = arith.divf %86, %87 : vector<8x128xbf16>
      %89 = vector.extract_strided_slice %72 {offsets = [0, 256], sizes = [8, 128], strides = [1, 1]} : vector<8x384xf32> to vector<8x128xf32>
      %90 = arith.addf %89, %15 : vector<8x128xf32>
      %91 = arith.truncf %90 : vector<8x128xf32> to vector<8x128xbf16>
      %92 = vector.extract_strided_slice %70 {offsets = [0, 256], sizes = [8, 128], strides = [1, 1]} : vector<8x384xf32> to vector<8x128xf32>
      %93 = arith.truncf %92 : vector<8x128xf32> to vector<8x128xbf16>
      %94 = arith.mulf %82, %91 : vector<8x128xbf16>
      %95 = arith.addf %93, %94 : vector<8x128xbf16>
      %96 = math.tanh %95 : vector<8x128xbf16>
      %97 = arith.extf %96 : vector<8x128xbf16> to vector<8x128xf32>
      %98 = arith.extf %88 : vector<8x128xbf16> to vector<8x128xf32>
      %99 = arith.subf %67, %97 : vector<8x128xf32>
      %100 = arith.mulf %98, %99 : vector<8x128xf32>
      %101 = arith.addf %97, %100 : vector<8x128xf32>
      %102 = arith.truncf %101 : vector<8x128xf32> to vector<8x128xbf16>
      %103 = arith.index_cast %66 : i32 to index
      %c0_41 = arith.constant 0 : index
      %c0_42 = arith.constant 0 : index
      %104 = vector.load %arg8[%103, %c0_41, %c0_42] : memref<8x8x128xbf16, #tpu.memory_space<vmem>>, vector<1x8x128xbf16>
      %105 = vector.shape_cast %104 : vector<1x8x128xbf16> to vector<8x128xbf16>
      %106 = vector.shape_cast %102 : vector<8x128xbf16> to vector<1x8x128xbf16>
      tpu.vector_store %arg8[%103, %c0_41, %c0_42], %106 {strides = array<i32>} : memref<8x8x128xbf16, #tpu.memory_space<vmem>>, vector<1x8x128xbf16>,
      %c0_43 = arith.constant 0 : index
      %c0_44 = arith.constant 0 : index
      %107 = vector.load %arg10[%c0_43, %c0_44] : memref<8x128xf32, #tpu.memory_space<vmem>>, vector<8x128xf32>
      tpu.vector_store %arg10[%c0_43, %c0_44], %101 {strides = array<i32>} : memref<8x128xf32, #tpu.memory_space<vmem>>, vector<8x128xf32>,
      %c4_i32_45 = arith.constant 4 : i32
      %108 = arith.muli %21, %c4_i32_45 : i32
      %c2_i32_46 = arith.constant 2 : i32
      %109 = arith.addi %108, %c2_i32_46 : i32
      %c0_47 = arith.constant 0 : index
      %c0_48 = arith.constant 0 : index
      %110 = vector.load %arg10[%c0_47, %c0_48] : memref<8x128xf32, #tpu.memory_space<vmem>>, vector<8x128xf32>
      %111 = arith.index_cast %109 : i32 to index
      %c0_49 = arith.constant 0 : index
      %c0_50 = arith.constant 0 : index
      %112 = vector.load %arg11[%111, %c0_49, %c0_50] : memref<8x8x384xf32, #tpu.memory_space<vmem>>, vector<1x8x384xf32>
      %113 = vector.shape_cast %112 : vector<1x8x384xf32> to vector<8x384xf32>
      %114 = arith.truncf %110 : vector<8x128xf32> to vector<8x128xbf16>
      %cst_51 = arith.constant dense<0.000000e+00> : vector<8x384xf32>
      %115 = tpu.matmul %114, %12, %cst_51 {dimension_numbers = #tpu.dot_dimension_numbers<[1], [0], [0], [1], [0, 0, 1, 1], [], []>} : vector<8x128xbf16>, vector<128x384xbf16>, vector<8x384xf32> -> vector<8x384xf32>
      %116 = vector.extract_strided_slice %113 {offsets = [0, 0], sizes = [8, 256], strides = [1, 1]} : vector<8x384xf32> to vector<8x256xf32>
      %117 = vector.extract_strided_slice %115 {offsets = [0, 0], sizes = [8, 256], strides = [1, 1]} : vector<8x384xf32> to vector<8x256xf32>
      %118 = arith.addf %116, %117 : vector<8x256xf32>
      %119 = arith.truncf %118 : vector<8x256xf32> to vector<8x256xbf16>
      %120 = vector.extract_strided_slice %119 {offsets = [0, 0], sizes = [8, 128], strides = [1, 1]} : vector<8x256xbf16> to vector<8x128xbf16>
      %121 = arith.negf %120 : vector<8x128xbf16>
      %122 = math.exp %121 : vector<8x128xbf16>
      %cst_52 = arith.constant 1.000000e+00 : bf16
      %123 = vector.broadcast %cst_52 : bf16 to vector<8x128xbf16>
      %124 = arith.addf %123, %122 : vector<8x128xbf16>
      %125 = arith.divf %123, %124 : vector<8x128xbf16>
      %126 = vector.extract_strided_slice %119 {offsets = [0, 128], sizes = [8, 128], strides = [1, 1]} : vector<8x256xbf16> to vector<8x128xbf16>
      %127 = arith.negf %126 : vector<8x128xbf16>
      %128 = math.exp %127 : vector<8x128xbf16>
      %cst_53 = arith.constant 1.000000e+00 : bf16
      %129 = vector.broadcast %cst_53 : bf16 to vector<8x128xbf16>
      %130 = arith.addf %129, %128 : vector<8x128xbf16>
      %131 = arith.divf %129, %130 : vector<8x128xbf16>
      %132 = vector.extract_strided_slice %115 {offsets = [0, 256], sizes = [8, 128], strides = [1, 1]} : vector<8x384xf32> to vector<8x128xf32>
      %133 = arith.addf %132, %15 : vector<8x128xf32>
      %134 = arith.truncf %133 : vector<8x128xf32> to vector<8x128xbf16>
      %135 = vector.extract_strided_slice %113 {offsets = [0, 256], sizes = [8, 128], strides = [1, 1]} : vector<8x384xf32> to vector<8x128xf32>
      %136 = arith.truncf %135 : vector<8x128xf32> to vector<8x128xbf16>
      %137 = arith.mulf %125, %134 : vector<8x128xbf16>
      %138 = arith.addf %136, %137 : vector<8x128xbf16>
      %139 = math.tanh %138 : vector<8x128xbf16>
      %140 = arith.extf %139 : vector<8x128xbf16> to vector<8x128xf32>
      %141 = arith.extf %131 : vector<8x128xbf16> to vector<8x128xf32>
      %142 = arith.subf %110, %140 : vector<8x128xf32>
      %143 = arith.mulf %141, %142 : vector<8x128xf32>
      %144 = arith.addf %140, %143 : vector<8x128xf32>
      %145 = arith.truncf %144 : vector<8x128xf32> to vector<8x128xbf16>
      %146 = arith.index_cast %109 : i32 to index
      %c0_54 = arith.constant 0 : index
      %c0_55 = arith.constant 0 : index
      %147 = vector.load %arg8[%146, %c0_54, %c0_55] : memref<8x8x128xbf16, #tpu.memory_space<vmem>>, vector<1x8x128xbf16>
      %148 = vector.shape_cast %147 : vector<1x8x128xbf16> to vector<8x128xbf16>
      %149 = vector.shape_cast %145 : vector<8x128xbf16> to vector<1x8x128xbf16>
      tpu.vector_store %arg8[%146, %c0_54, %c0_55], %149 {strides = array<i32>} : memref<8x8x128xbf16, #tpu.memory_space<vmem>>, vector<1x8x128xbf16>,
      %c0_56 = arith.constant 0 : index
      %c0_57 = arith.constant 0 : index
      %150 = vector.load %arg10[%c0_56, %c0_57] : memref<8x128xf32, #tpu.memory_space<vmem>>, vector<8x128xf32>
      tpu.vector_store %arg10[%c0_56, %c0_57], %144 {strides = array<i32>} : memref<8x128xf32, #tpu.memory_space<vmem>>, vector<8x128xf32>,
      %c4_i32_58 = arith.constant 4 : i32
      %151 = arith.muli %21, %c4_i32_58 : i32
      %c3_i32 = arith.constant 3 : i32
      %152 = arith.addi %151, %c3_i32 : i32
      %c0_59 = arith.constant 0 : index
      %c0_60 = arith.constant 0 : index
      %153 = vector.load %arg10[%c0_59, %c0_60] : memref<8x128xf32, #tpu.memory_space<vmem>>, vector<8x128xf32>
      %154 = arith.index_cast %152 : i32 to index
      %c0_61 = arith.constant 0 : index
      %c0_62 = arith.constant 0 : index
      %155 = vector.load %arg11[%154, %c0_61, %c0_62] : memref<8x8x384xf32, #tpu.memory_space<vmem>>, vector<1x8x384xf32>
      %156 = vector.shape_cast %155 : vector<1x8x384xf32> to vector<8x384xf32>
      %157 = arith.truncf %153 : vector<8x128xf32> to vector<8x128xbf16>
      %cst_63 = arith.constant dense<0.000000e+00> : vector<8x384xf32>
      %158 = tpu.matmul %157, %12, %cst_63 {dimension_numbers = #tpu.dot_dimension_numbers<[1], [0], [0], [1], [0, 0, 1, 1], [], []>} : vector<8x128xbf16>, vector<128x384xbf16>, vector<8x384xf32> -> vector<8x384xf32>
      %159 = vector.extract_strided_slice %156 {offsets = [0, 0], sizes = [8, 256], strides = [1, 1]} : vector<8x384xf32> to vector<8x256xf32>
      %160 = vector.extract_strided_slice %158 {offsets = [0, 0], sizes = [8, 256], strides = [1, 1]} : vector<8x384xf32> to vector<8x256xf32>
      %161 = arith.addf %159, %160 : vector<8x256xf32>
      %162 = arith.truncf %161 : vector<8x256xf32> to vector<8x256xbf16>
      %163 = vector.extract_strided_slice %162 {offsets = [0, 0], sizes = [8, 128], strides = [1, 1]} : vector<8x256xbf16> to vector<8x128xbf16>
      %164 = arith.negf %163 : vector<8x128xbf16>
      %165 = math.exp %164 : vector<8x128xbf16>
      %cst_64 = arith.constant 1.000000e+00 : bf16
      %166 = vector.broadcast %cst_64 : bf16 to vector<8x128xbf16>
      %167 = arith.addf %166, %165 : vector<8x128xbf16>
      %168 = arith.divf %166, %167 : vector<8x128xbf16>
      %169 = vector.extract_strided_slice %162 {offsets = [0, 128], sizes = [8, 128], strides = [1, 1]} : vector<8x256xbf16> to vector<8x128xbf16>
      %170 = arith.negf %169 : vector<8x128xbf16>
      %171 = math.exp %170 : vector<8x128xbf16>
      %cst_65 = arith.constant 1.000000e+00 : bf16
      %172 = vector.broadcast %cst_65 : bf16 to vector<8x128xbf16>
      %173 = arith.addf %172, %171 : vector<8x128xbf16>
      %174 = arith.divf %172, %173 : vector<8x128xbf16>
      %175 = vector.extract_strided_slice %158 {offsets = [0, 256], sizes = [8, 128], strides = [1, 1]} : vector<8x384xf32> to vector<8x128xf32>
      %176 = arith.addf %175, %15 : vector<8x128xf32>
      %177 = arith.truncf %176 : vector<8x128xf32> to vector<8x128xbf16>
      %178 = vector.extract_strided_slice %156 {offsets = [0, 256], sizes = [8, 128], strides = [1, 1]} : vector<8x384xf32> to vector<8x128xf32>
      %179 = arith.truncf %178 : vector<8x128xf32> to vector<8x128xbf16>
      %180 = arith.mulf %168, %177 : vector<8x128xbf16>
      %181 = arith.addf %179, %180 : vector<8x128xbf16>
      %182 = math.tanh %181 : vector<8x128xbf16>
      %183 = arith.extf %182 : vector<8x128xbf16> to vector<8x128xf32>
      %184 = arith.extf %174 : vector<8x128xbf16> to vector<8x128xf32>
      %185 = arith.subf %153, %183 : vector<8x128xf32>
      %186 = arith.mulf %184, %185 : vector<8x128xf32>
      %187 = arith.addf %183, %186 : vector<8x128xf32>
      %188 = arith.truncf %187 : vector<8x128xf32> to vector<8x128xbf16>
      %189 = arith.index_cast %152 : i32 to index
      %c0_66 = arith.constant 0 : index
      %c0_67 = arith.constant 0 : index
      %190 = vector.load %arg8[%189, %c0_66, %c0_67] : memref<8x8x128xbf16, #tpu.memory_space<vmem>>, vector<1x8x128xbf16>
      %191 = vector.shape_cast %190 : vector<1x8x128xbf16> to vector<8x128xbf16>
      %192 = vector.shape_cast %188 : vector<8x128xbf16> to vector<1x8x128xbf16>
      tpu.vector_store %arg8[%189, %c0_66, %c0_67], %192 {strides = array<i32>} : memref<8x8x128xbf16, #tpu.memory_space<vmem>>, vector<1x8x128xbf16>,
      %c0_68 = arith.constant 0 : index
      %c0_69 = arith.constant 0 : index
      %193 = vector.load %arg10[%c0_68, %c0_69] : memref<8x128xf32, #tpu.memory_space<vmem>>, vector<8x128xf32>
      tpu.vector_store %arg10[%c0_68, %c0_69], %187 {strides = array<i32>} : memref<8x128xf32, #tpu.memory_space<vmem>>, vector<8x128xf32>,
    }
    %c2_i32_15 = arith.constant 2 : i32
    %c0_i32_16 = arith.constant 0 : i32
    %17 = arith.cmpi eq, %arg1, %c0_i32_16 : i32
    %18 = arith.extui %17 : i1 to i32
    %c0_i32_17 = arith.constant 0 : i32
    %19 = arith.cmpi ne, %18, %c0_i32_17 : i32
    scf.if %19 {
      %c0_18 = arith.constant 0 : index
      %c0_19 = arith.constant 0 : index
      %20 = vector.load %arg10[%c0_18, %c0_19] : memref<8x128xf32, #tpu.memory_space<vmem>>, vector<8x128xf32>
      %c0_20 = arith.constant 0 : index
      %c0_21 = arith.constant 0 : index
      %21 = vector.load %arg9[%c0_20, %c0_21] : memref<8x128xf32, #tpu.memory_space<vmem>>, vector<8x128xf32>
      tpu.vector_store %arg9[%c0_20, %c0_21], %20 {strides = array<i32>} : memref<8x128xf32, #tpu.memory_space<vmem>>, vector<8x128xf32>,
    } else {
    }
    return
  }
  func.func @transform_0(%arg0: i32, %arg1: i32) -> (i32, i32, i32) {
    %c0_i32 = arith.constant 0 : i32
    %c0_i32_0 = arith.constant 0 : i32
    return %arg1, %arg0, %c0_i32 : i32, i32, i32
  }
  func.func @transform_1(%arg0: i32, %arg1: i32) -> (i32, i32) {
    %c0_i32 = arith.constant 0 : i32
    %c0_i32_0 = arith.constant 0 : i32
    return %arg0, %c0_i32 : i32, i32
  }
  func.func @transform_2(%arg0: i32, %arg1: i32) -> (i32, i32) {
    %c0_i32 = arith.constant 0 : i32
    %c0_i32_0 = arith.constant 0 : i32
    %c0_i32_1 = arith.constant 0 : i32
    return %c0_i32, %c0_i32_0 : i32, i32
  }
  func.func @transform_3(%arg0: i32, %arg1: i32) -> (i32, i32) {
    %c0_i32 = arith.constant 0 : i32
    %c0_i32_0 = arith.constant 0 : i32
    %c0_i32_1 = arith.constant 0 : i32
    return %c0_i32, %c0_i32_0 : i32, i32
  }
  func.func @transform_4(%arg0: i32, %arg1: i32) -> (i32, i32) {
    %c0_i32 = arith.constant 0 : i32
    %c0_i32_0 = arith.constant 0 : i32
    %c0_i32_1 = arith.constant 0 : i32
    return %c0_i32, %c0_i32_0 : i32, i32
  }
  func.func @transform_5(%arg0: i32, %arg1: i32) -> (i32, i32) {
    %c0_i32 = arith.constant 0 : i32
    %c0_i32_0 = arith.constant 0 : i32
    %c0_i32_1 = arith.constant 0 : i32
    return %c0_i32, %c0_i32_0 : i32, i32
  }
  func.func @transform_6(%arg0: i32, %arg1: i32) -> (i32, i32, i32) {
    %c0_i32 = arith.constant 0 : i32
    %c0_i32_0 = arith.constant 0 : i32
    return %arg1, %arg0, %c0_i32 : i32, i32, i32
  }
  func.func @transform_7(%arg0: i32, %arg1: i32) -> (i32, i32) {
    %c0_i32 = arith.constant 0 : i32
    %c0_i32_0 = arith.constant 0 : i32
    return %arg0, %c0_i32 : i32, i32
  }
}

module attributes {stable_mosaic.version = 11 : i64} {
  func.func @_matmul_bias_kernel(%arg0: i32, %arg1: i32, %arg2: i32, %arg3: memref<32x128xbf16, #tpu.memory_space<vmem>>, %arg4: memref<128x128xbf16, #tpu.memory_space<vmem>>, %arg5: memref<1x128xf32, #tpu.memory_space<vmem>>, %arg6: memref<32x128xf32, #tpu.memory_space<vmem>>, %arg7: memref<32x128xf32, #tpu.memory_space<vmem>>) attributes {dimension_semantics = [#tpu.dimension_semantics<parallel>, #tpu.dimension_semantics<parallel>, #tpu.dimension_semantics<arbitrary>], iteration_bounds = array<i64: 1, 1, 1>, scalar_prefetch = 0 : i64, scratch_operands = 1 : i64, tpu.core_type = #tpu.core_type<tc>, window_params = [{transform_indices = @transform_0, window_bounds = array<i64: 32, 128>}, {transform_indices = @transform_1, window_bounds = array<i64: 128, 128>}, {transform_indices = @transform_2, window_bounds = array<i64: 1, 128>}, {transform_indices = @transform_3, window_bounds = array<i64: 32, 128>}]} {
    %c0_i32 = arith.constant 0 : i32
    %0 = arith.cmpi eq, %arg2, %c0_i32 : i32
    %1 = arith.extui %0 : i1 to i32
    %c0_i32_0 = arith.constant 0 : i32
    %2 = arith.cmpi ne, %1, %c0_i32_0 : i32
    scf.if %2 {
      %cst_10 = arith.constant 0.000000e+00 : f32
      %12 = vector.broadcast %cst_10 : f32 to vector<32x128xf32>
      %c0_11 = arith.constant 0 : index
      %c0_12 = arith.constant 0 : index
      %13 = vector.load %arg7[%c0_11, %c0_12] : memref<32x128xf32, #tpu.memory_space<vmem>>, vector<32x128xf32>
      tpu.vector_store %arg7[%c0_11, %c0_12], %12 {strides = array<i32>} : memref<32x128xf32, #tpu.memory_space<vmem>>, vector<32x128xf32>,
    } else {
    }
    %c0 = arith.constant 0 : index
    %c0_1 = arith.constant 0 : index
    %3 = vector.load %arg7[%c0, %c0_1] : memref<32x128xf32, #tpu.memory_space<vmem>>, vector<32x128xf32>
    %c0_2 = arith.constant 0 : index
    %c0_3 = arith.constant 0 : index
    %4 = vector.load %arg3[%c0_2, %c0_3] : memref<32x128xbf16, #tpu.memory_space<vmem>>, vector<32x128xbf16>
    %c0_4 = arith.constant 0 : index
    %c0_5 = arith.constant 0 : index
    %5 = vector.load %arg4[%c0_4, %c0_5] : memref<128x128xbf16, #tpu.memory_space<vmem>>, vector<128x128xbf16>
    %cst = arith.constant dense<0.000000e+00> : vector<32x128xf32>
    %6 = tpu.matmul %4, %5, %cst {dimension_numbers = #tpu.dot_dimension_numbers<[1], [0], [0], [1], [0, 0, 1, 1], [], []>} : vector<32x128xbf16>, vector<128x128xbf16>, vector<32x128xf32> -> vector<32x128xf32>
    %7 = arith.addf %3, %6 : vector<32x128xf32>
    %c0_6 = arith.constant 0 : index
    %c0_7 = arith.constant 0 : index
    %8 = vector.load %arg7[%c0_6, %c0_7] : memref<32x128xf32, #tpu.memory_space<vmem>>, vector<32x128xf32>
    tpu.vector_store %arg7[%c0_6, %c0_7], %7 {strides = array<i32>} : memref<32x128xf32, #tpu.memory_space<vmem>>, vector<32x128xf32>,
    %c0_i32_8 = arith.constant 0 : i32
    %9 = arith.cmpi eq, %arg2, %c0_i32_8 : i32
    %10 = arith.extui %9 : i1 to i32
    %c0_i32_9 = arith.constant 0 : i32
    %11 = arith.cmpi ne, %10, %c0_i32_9 : i32
    scf.if %11 {
      %c0_10 = arith.constant 0 : index
      %c0_11 = arith.constant 0 : index
      %12 = vector.load %arg7[%c0_10, %c0_11] : memref<32x128xf32, #tpu.memory_space<vmem>>, vector<32x128xf32>
      %c0_12 = arith.constant 0 : index
      %c0_13 = arith.constant 0 : index
      %13 = vector.load %arg5[%c0_12, %c0_13] : memref<1x128xf32, #tpu.memory_space<vmem>>, vector<1x128xf32>
      %14 = vector.broadcast %13 : vector<1x128xf32> to vector<32x128xf32>
      %15 = arith.addf %12, %14 : vector<32x128xf32>
      %c0_14 = arith.constant 0 : index
      %c0_15 = arith.constant 0 : index
      %16 = vector.load %arg6[%c0_14, %c0_15] : memref<32x128xf32, #tpu.memory_space<vmem>>, vector<32x128xf32>
      tpu.vector_store %arg6[%c0_14, %c0_15], %15 {strides = array<i32>} : memref<32x128xf32, #tpu.memory_space<vmem>>, vector<32x128xf32>,
    } else {
    }
    return
  }
  func.func @transform_0(%arg0: i32, %arg1: i32, %arg2: i32) -> (i32, i32) {
    %c0_i32 = arith.constant 0 : i32
    return %arg0, %arg2 : i32, i32
  }
  func.func @transform_1(%arg0: i32, %arg1: i32, %arg2: i32) -> (i32, i32) {
    %c0_i32 = arith.constant 0 : i32
    return %arg2, %arg1 : i32, i32
  }
  func.func @transform_2(%arg0: i32, %arg1: i32, %arg2: i32) -> (i32, i32) {
    %c0_i32 = arith.constant 0 : i32
    %c0_i32_0 = arith.constant 0 : i32
    return %c0_i32, %arg1 : i32, i32
  }
  func.func @transform_3(%arg0: i32, %arg1: i32, %arg2: i32) -> (i32, i32) {
    %c0_i32 = arith.constant 0 : i32
    return %arg0, %arg1 : i32, i32
  }
}

</mosaic_0001>

<llo_original>
// kernel: tpu_custom_call.1
$region0: #{tpu_custom_call.1}
  #allocation0 [shape = 'u32[]', space=smem, size = 0x4, offset = 0x4, fixed_abs, tag = 'smem constant byte address 0x4 - core index']
  #allocation1 [shape = 'u32[144,128]{1,0:T(1,128)}', space=vmem, size = 0x12000, scoped, tag = 'internal scratch']
  %s0 = inlined_call_operand.hbm [shape: f32[8,128], index: 0, kind: input, shape index: {}]
  %s1 = inlined_call_operand.hbm [shape: f32[16,128], index: 1, kind: input, shape index: {}]
  %s2 = inlined_call_operand.hbm [shape: f32[16,128], index: 2, kind: output, shape index: {}]
  %s3 = sld [smem:[#allocation0]]
  $region49: #{tpu_custom_call.1} parent=0
    _
  %s5 = ssub.s32 1, %s3
  %s6 = scalar_select 0, %s5, %s3
  $region1: #{tpu_custom_call.1} parent=0
    #allocation2 [shape = 'u8[4096]{0}', space=vmem, size = 0x1000, scoped, tag = 'input window, operand 0, single buffered']
    #allocation3 [shape = 's32[2]{0}', space=sflag, size = 0x8, scoped, tag = 'scoped memory for tpu_custom_call.1']
    #allocation4 [shape = 's32[2]{0}', space=sflag, size = 0x8, scoped, tag = 'scoped memory for tpu_custom_call.1']
    #allocation5 [shape = 'u8[8192]{0}', space=vmem, size = 0x2000, scoped, tag = 'input window, operand 1']
    #allocation6 [shape = 's32[2]{0}', space=sflag, size = 0x8, scoped, tag = 'scoped memory for tpu_custom_call.1']
    #allocation7 [shape = 'u8[8192]{0}', space=vmem, size = 0x2000, scoped, tag = 'output window, operand 0']
    %7 = vsyncpa [#allocation3], 0
    %8 = vsyncpa [#allocation6], 0
    %s9 = scalar_lea.sflag [#allocation6], 1
    %10 = vsyncpa %s9, 0
    %11 = vsyncpa [#allocation4], 0
    %s12 = scalar_lea.sflag [#allocation4], 1
    %13 = vsyncpa %s12, 0
    loop: start=0, step=1, limit=4
    $region2: #{tpu_custom_call.1} parent=1 // loop_pre_header
      _
    $region3: #{tpu_custom_call.1} parent=1 // loop_header
      %s15 = sphi 0, %s19
      %p16 = scmp.ge.s32.totalorder %s15, 4
      %s23 = sphi 0, %s23
      %s25 = sphi 0, %s23
      %s26 = sphi 0, %s25
      %s40 = sphi 0, %s26
      %s46 = sphi 0, %s48
      %s49 = sphi 0, %s46
      %s50 = sphi 0, %s49
      %s66 = sphi 0, %s50
      %s72 = sphi 0, %s74
      %s75 = sphi 0, %s72
      %s76 = sphi 0, %s75
      %s92 = sphi 0, %s76
    $region4: #{tpu_custom_call.1} parent=1 // loop_header_branch
      %18 = sbr.rel (%p16) target = $region8
    $region5: #{tpu_custom_call.1} parent=1 // loop_body
      %s20 = ssub.s32 %s15, 1
      %s21 = ssub.s32 %s15, 2
      %s22 = sadd.s32 %s15, 1
      %s24 = sadd.s32 %s23, 1
      %p27 = scmp.eq.s32.totalorder %s15, 1
      %p28 = scmp.ne.s32.totalorder %s23, %s25
      %p29 = scmp.eq.s32.totalorder %s15, 0
      %p30 = por %p28, %p29
      %p31 = scmp.ne.s32.totalorder %s23, %s25
      %p32 = scmp.eq.s32.totalorder %s20, 1
      %p33 = por %p31, %p32
      %p34 = scmp.ne.s32.totalorder %s25, %s26
      %p35 = scmp.eq.s32.totalorder %s20, 0
      %p36 = por %p34, %p35
      %p37 = scmp.ne.s32.totalorder %s25, %s26
      %p38 = scmp.eq.s32.totalorder %s21, 1
      %p39 = por %p37, %p38
      %p41 = scmp.ne.s32.totalorder %s26, %s40
      %p42 = scmp.eq.s32.totalorder %s21, 0
      %p43 = por %p41, %p42
      %s44 = ssub.s32 %s15, %s22
      %p45 = scmp.eq.s32.totalorder %s44, 0
      %s47 = sadd.s32 %s46, 1
      %s48 = scalar_select %p45, %s46, %s47
      %p51 = pneg %p45
      %p52 = scmp.eq.s32.totalorder %s15, 1
      %p53 = por %p51, %p52
      %p54 = scmp.ne.s32.totalorder %s46, %s49
      %p55 = scmp.eq.s32.totalorder %s15, 0
      %p56 = por %p54, %p55
      %p57 = scmp.ne.s32.totalorder %s46, %s49
      %p58 = scmp.eq.s32.totalorder %s20, 1
      %p59 = por %p57, %p58
      %p60 = scmp.ne.s32.totalorder %s49, %s50
      %p61 = scmp.eq.s32.totalorder %s20, 0
      %p62 = por %p60, %p61
      %p63 = scmp.ne.s32.totalorder %s49, %s50
      %p64 = scmp.eq.s32.totalorder %s21, 1
      %p65 = por %p63, %p64
      %p67 = scmp.ne.s32.totalorder %s50, %s66
      %p68 = scmp.eq.s32.totalorder %s21, 0
      %p69 = por %p67, %p68
      %s70 = ssub.s32 %s15, %s22
      %p71 = scmp.eq.s32.totalorder %s70, 0
      %s73 = sadd.s32 %s72, 1
      %s74 = scalar_select %p71, %s72, %s73
      %p77 = pneg %p71
      %p78 = scmp.eq.s32.totalorder %s15, 1
      %p79 = por %p77, %p78
      %p80 = scmp.ne.s32.totalorder %s72, %s75
      %p81 = scmp.eq.s32.totalorder %s15, 0
      %p82 = por %p80, %p81
      %p83 = scmp.ne.s32.totalorder %s72, %s75
      %p84 = scmp.eq.s32.totalorder %s20, 1
      %p85 = por %p83, %p84
      %p86 = scmp.ne.s32.totalorder %s75, %s76
      %p87 = scmp.eq.s32.totalorder %s20, 0
      %p88 = por %p86, %p87
      %p89 = scmp.ne.s32.totalorder %s75, %s76
      %p90 = scmp.eq.s32.totalorder %s21, 1
      %p91 = por %p89, %p90
      %p93 = scmp.ne.s32.totalorder %s76, %s92
      %p94 = scmp.eq.s32.totalorder %s21, 0
      %p95 = por %p93, %p94
      %p96 = scmp.le.s32.totalorder 1, %s15
      %p97 = scmp.lt.s32.totalorder %s15, 3
      %p98 = pnand %p96, %p97
      %p99 = pneg %p98
      // Predicated region
      $region9: #{tpu_custom_call.1} parent=5 // pred_check
        _
      $region10: #{tpu_custom_call.1} parent=5 // pred_check_branch
        %101 = sbr.rel (%p98) target = $region12
      $region11: #{tpu_custom_call.1} parent=5 // pred_region
        %s102 = ssub.s32 %s15, 1
        // Predicated region
        $region13: #{tpu_custom_call.1} parent=11 // pred_check
          %p103 = pneg %p36
        $region14: #{tpu_custom_call.1} parent=11 // pred_check_branch
          %105 = sbr.rel (%p103) target = $region16
        $region15: #{tpu_custom_call.1} parent=11 // pred_region
          %s107 = ssub.s32 128, 128
          %108 = vsyncadd [#allocation3], %s107
          %s110 = sshll.u32 [#allocation2], 4
          %s111 = int_to_ptr.vmem [resolvable:$true] %s110
          %113 = dma.hbm_to_vmem [thread:$0]  %s0, 128, %s111, [#allocation3]
        $region16: #{tpu_custom_call.1} parent=11 // pred_fallthru
          _
      $region12: #{tpu_custom_call.1} parent=5 // pred_fallthru
        _
      %p114 = scmp.lt.s32.totalorder %s15, 2
      // Predicated region
      $region17: #{tpu_custom_call.1} parent=5 // pred_check
        %p115 = pneg %p114
      $region18: #{tpu_custom_call.1} parent=5 // pred_check_branch
        %117 = sbr.rel (%p115) target = $region20
      $region19: #{tpu_custom_call.1} parent=5 // pred_region
        // Predicated region
        $region21: #{tpu_custom_call.1} parent=19 // pred_check
          %p118 = pneg %p56
        $region22: #{tpu_custom_call.1} parent=19 // pred_check_branch
          %120 = sbr.rel (%p118) target = $region24
        $region23: #{tpu_custom_call.1} parent=19 // pred_region
          %s121 = sand.u32 %s46, 1
          %s122 = scalar_lea.sflag [#allocation6], %s121
          %s123 = sand.u32 %s46, 1
          %s124 = smul.addr %s123, 8
          %s125 = scalar_lea.vmem [#allocation5], %s124
          %s127 = ssub.s32 128, 128
          %128 = vsyncadd %s122, %s127
          %s129 = smul.addr %s15, 128
          %s130 = scalar_lea.hbm %s1, %s129
          %s132 = sshll.u32 %s125, 4
          %s133 = int_to_ptr.vmem [resolvable:$true] %s132
          %135 = dma.hbm_to_vmem [thread:$0]  %s130, 128, %s133, %s122
        $region24: #{tpu_custom_call.1} parent=19 // pred_fallthru
          _
      $region20: #{tpu_custom_call.1} parent=5 // pred_fallthru
        _
      %p136 = scmp.le.s32.totalorder 1, %s15
      %p137 = scmp.lt.s32.totalorder %s15, 3
      %p138 = pnand %p136, %p137
      %p139 = pneg %p138
      // Predicated region
      $region25: #{tpu_custom_call.1} parent=5 // pred_check
        _
      $region26: #{tpu_custom_call.1} parent=5 // pred_check_branch
        %141 = sbr.rel (%p138) target = $region28
      $region27: #{tpu_custom_call.1} parent=5 // pred_region
        %s142 = ssub.s32 %s15, 1
        // Predicated region
        $region29: #{tpu_custom_call.1} parent=27 // pred_check
          %p143 = pneg %p36
        $region30: #{tpu_custom_call.1} parent=27 // pred_check_branch
          %145 = sbr.rel (%p143) target = $region32
        $region31: #{tpu_custom_call.1} parent=27 // pred_region
          %146 = dma.done [#allocation3], 128
        $region32: #{tpu_custom_call.1} parent=27 // pred_fallthru
          _
        %s147 = sand.u32 %s49, 1
        %s148 = scalar_lea.sflag [#allocation6], %s147
        %s149 = sand.u32 %s49, 1
        %s150 = smul.addr %s149, 8
        %s151 = scalar_lea.vmem [#allocation5], %s150
        // Predicated region
        $region33: #{tpu_custom_call.1} parent=27 // pred_check
          %p152 = pneg %p62
        $region34: #{tpu_custom_call.1} parent=27 // pred_check_branch
          %154 = sbr.rel (%p152) target = $region36
        $region35: #{tpu_custom_call.1} parent=27 // pred_region
          %155 = dma.done %s148, 128
        $region36: #{tpu_custom_call.1} parent=27 // pred_fallthru
          _
        %p156 = pneg %p36
        %p157 = pneg %p33
        %s158 = sand.u32 %s49, 1
        %s159 = scalar_lea.sflag [#allocation6], %s158
        %s160 = sand.u32 %s49, 1
        %s161 = smul.addr %s160, 8
        %s162 = scalar_lea.vmem [#allocation5], %s161
        %p163 = pneg %p62
        %p164 = pneg %p59
        %p165 = pneg %p88
        %p166 = pneg %p85
        %s167 = sand.u32 %s75, 1
        %s168 = scalar_lea.sflag [#allocation4], %s167
        %s169 = sand.u32 %s75, 1
        %s170 = smul.addr %s169, 8
        %s171 = scalar_lea.vmem [#allocation7], %s170
        %v172 = vld [vmem:[#allocation2] sm:$0xff]
        %v173 = vld [vmem:[%s151] sm:$0xff]
        %v174 = vadd.f32 %v172, %v173
        %175 = vst [vmem:[%s171] sm:$0xff] %v174
        %s176 = sand.u32 %s75, 1
        %s177 = scalar_lea.sflag [#allocation4], %s176
        %s178 = sand.u32 %s75, 1
        %s179 = smul.addr %s178, 8
        %s180 = scalar_lea.vmem [#allocation7], %s179
        // Predicated region
        $region37: #{tpu_custom_call.1} parent=27 // pred_check
          %p181 = pneg %p85
        $region38: #{tpu_custom_call.1} parent=27 // pred_check_branch
          %183 = sbr.rel (%p181) target = $region40
        $region39: #{tpu_custom_call.1} parent=27 // pred_region
          %s185 = ssub.s32 128, 128
          %186 = vsyncadd %s177, %s185
          %s187 = smul.addr %s20, 128
          %s188 = scalar_lea.hbm %s2, %s187
          %s190 = sshll.u32 %s180, 4
          %s191 = int_to_ptr.vmem [resolvable:$true] %s190
          %193 = dma.vmem_to_hbm [thread:$0]  %s191, 128, %s188, %s177
        $region40: #{tpu_custom_call.1} parent=27 // pred_fallthru
          _
      $region28: #{tpu_custom_call.1} parent=5 // pred_fallthru
        _
      %p194 = scmp.le.s32.totalorder 2, %s15
      // Predicated region
      $region41: #{tpu_custom_call.1} parent=5 // pred_check
        %p195 = pneg %p194
      $region42: #{tpu_custom_call.1} parent=5 // pred_check_branch
        %197 = sbr.rel (%p195) target = $region44
      $region43: #{tpu_custom_call.1} parent=5 // pred_region
        %s198 = ssub.s32 %s15, 2
        // Predicated region
        $region45: #{tpu_custom_call.1} parent=43 // pred_check
          %p199 = pneg %p91
        $region46: #{tpu_custom_call.1} parent=43 // pred_check_branch
          %201 = sbr.rel (%p199) target = $region48
        $region47: #{tpu_custom_call.1} parent=43 // pred_region
          %s202 = sand.u32 %s76, 1
          %s203 = scalar_lea.sflag [#allocation4], %s202
          %s204 = sand.u32 %s76, 1
          %s205 = smul.addr %s204, 8
          %s206 = scalar_lea.vmem [#allocation7], %s205
          %207 = dma.done %s203, 128
        $region48: #{tpu_custom_call.1} parent=43 // pred_fallthru
          _
      $region44: #{tpu_custom_call.1} parent=5 // pred_fallthru
        _
    $region6: #{tpu_custom_call.1} parent=1 // loop_footer
      %s19 = sadd.s32 1, %s15
    $region7: #{tpu_custom_call.1} parent=1 // loop_footer_branch
      %14 = sbr.rel target = $region3
    $region8: #{tpu_custom_call.1} parent=1 // loop_exit
      _
    %208 = vsyncpa [#allocation3], 1
    %s209 = scalar_lea.sflag [#allocation3], 1
    %210 = vsyncpa %s209, 1
    %211 = vsyncpa [#allocation6], 1
    %s212 = scalar_lea.sflag [#allocation6], 1
    %213 = vsyncpa %s212, 1
    %214 = vsyncpa [#allocation4], 1
    %s215 = scalar_lea.sflag [#allocation4], 1
    %216 = vsyncpa %s215, 1

// kernel: _forward.5
$region0: #{_forward.5}
  #allocation0 [shape = 'u32[]', space=smem, size = 0x4, offset = 0x4, fixed_abs, tag = 'smem constant byte address 0x4 - core index']
  #allocation1 [shape = 'u32[144,128]{1,0:T(1,128)}', space=vmem, size = 0x12000, scoped, tag = 'internal scratch']
  #allocation2 [shape = 'f32[32,128]{1,0:T(8,128)}', space=vmem, size = 0x4000, scoped, tag = 'scratch operand']
  %s0 = inlined_call_operand.vmem [shape: bf16[32,128], index: 0, kind: input, shape index: {}]
  %s1 = inlined_call_operand.vmem [shape: bf16[128,128], index: 1, kind: input, shape index: {}]
  %s2 = inlined_call_operand.vmem [shape: f32[1,128], index: 2, kind: input, shape index: {}]
  %s3 = inlined_call_operand.hbm [shape: f32[32,128], index: 3, kind: output, shape index: {}]
  %s4 = sld [smem:[#allocation0]]
  $region30: #{_forward.5} parent=0
    _
  %s6 = ssub.s32 1, %s4
  %s7 = scalar_select 0, %s6, %s4
  $region1: #{_forward.5} parent=0
    #allocation3 [shape = 'u8[16384]{0}', space=vmem, size = 0x4000, scoped, tag = 'output window, operand 0, single buffered']
    #allocation4 [shape = 's32[1]{0}', space=sflag, size = 0x4, scoped, tag = 'scoped memory for _forward.5']
    %8 = vsyncpa [#allocation4], 0
    // Predicated region
    $region2: #{_forward.5} parent=1 // pred_check
      _
    $region3: #{_forward.5} parent=1 // pred_check_branch
      %10 = sbr.rel (0) target = $region5
    $region4: #{_forward.5} parent=1 // pred_region
      _
    $region5: #{_forward.5} parent=1 // pred_fallthru
      _
    // Predicated region
    $region6: #{_forward.5} parent=1 // pred_check
      _
    $region7: #{_forward.5} parent=1 // pred_check_branch
      %12 = sbr.rel (0) target = $region9
    $region8: #{_forward.5} parent=1 // pred_region
      _
    $region9: #{_forward.5} parent=1 // pred_fallthru
      _
    // Predicated region
    $region10: #{_forward.5} parent=1 // pred_check
      _
    $region11: #{_forward.5} parent=1 // pred_check_branch
      %14 = sbr.rel (0) target = $region13
    $region12: #{_forward.5} parent=1 // pred_region
      _
    $region13: #{_forward.5} parent=1 // pred_fallthru
      _
    %p16 = scmp.eq.s32.totalorder 0, 0
    // Predicated region
    $region14: #{_forward.5} parent=1 // pred_check
      %p17 = pneg %p16
    $region15: #{_forward.5} parent=1 // pred_check_branch
      %19 = sbr.rel (%p17) target = $region17
    $region16: #{_forward.5} parent=1 // pred_region
      %20 = vst [vmem:[#allocation2] sm:$0xff] 0.0
      %21 = vst [vmem:[#allocation2 + $0x8] sm:$0xff] 0.0
      %22 = vst [vmem:[#allocation2 + $0x10] sm:$0xff] 0.0
      %23 = vst [vmem:[#allocation2 + $0x18] sm:$0xff] 0.0
    $region17: #{_forward.5} parent=1 // pred_fallthru
      _
    %v24 = vld [vmem:[#allocation2] sm:$0xff]
    %v25 = vld [vmem:[#allocation2 + $0x8] sm:$0xff]
    %v26 = vld [vmem:[#allocation2 + $0x10] sm:$0xff]
    %v27 = vld [vmem:[#allocation2 + $0x18] sm:$0xff]
    %v28 = vld [vmem:[%s0] sm:$0xf]
    %v29 = vld [vmem:[%s0 + $0x4] sm:$0xf]
    %v30 = vld [vmem:[%s0 + $0x8] sm:$0xf]
    %v31 = vld [vmem:[%s0 + $0xc] sm:$0xf]
    %v32 = vld [vmem:[%s1] sm:$0xf]
    %v33 = vld [vmem:[%s1 + $0x4] sm:$0xf]
    %v34 = vld [vmem:[%s1 + $0x8] sm:$0xf]
    %v35 = vld [vmem:[%s1 + $0xc] sm:$0xf]
    %v36 = vld [vmem:[%s1 + $0x10] sm:$0xf]
    %v37 = vld [vmem:[%s1 + $0x14] sm:$0xf]
    %v38 = vld [vmem:[%s1 + $0x18] sm:$0xf]
    %v39 = vld [vmem:[%s1 + $0x1c] sm:$0xf]
    %v40 = vld [vmem:[%s1 + $0x20] sm:$0xf]
    %v41 = vld [vmem:[%s1 + $0x24] sm:$0xf]
    %v42 = vld [vmem:[%s1 + $0x28] sm:$0xf]
    %v43 = vld [vmem:[%s1 + $0x2c] sm:$0xf]
    %v44 = vld [vmem:[%s1 + $0x30] sm:$0xf]
    %v45 = vld [vmem:[%s1 + $0x34] sm:$0xf]
    %v46 = vld [vmem:[%s1 + $0x38] sm:$0xf]
    %v47 = vld [vmem:[%s1 + $0x3c] sm:$0xf]
    %v52 = vunpack.c.l.b16 %v28
    %v53 = vunpack.c.l.b16 %v29
    %v54 = vunpack.c.l.b16 %v30
    %v55 = vunpack.c.l.b16 %v31
    %v56 = vpack.c.b16 %v53, %v52
    %v57 = vpack.c.b16 %v55, %v54
    %v76 = vunpack.c.l.b16 %v32
    %v77 = vunpack.c.l.b16 %v33
    %v78 = vunpack.c.l.b16 %v34
    %v79 = vunpack.c.l.b16 %v35
    %v80 = vunpack.c.l.b16 %v36
    %v81 = vunpack.c.l.b16 %v37
    %v82 = vunpack.c.l.b16 %v38
    %v83 = vunpack.c.l.b16 %v39
    %v84 = vunpack.c.l.b16 %v40
    %v85 = vunpack.c.l.b16 %v41
    %v86 = vunpack.c.l.b16 %v42
    %v87 = vunpack.c.l.b16 %v43
    %v88 = vunpack.c.l.b16 %v44
    %v89 = vunpack.c.l.b16 %v45
    %v90 = vunpack.c.l.b16 %v46
    %v91 = vunpack.c.l.b16 %v47
    %v92 = vpack.c.b16 %v77, %v76
    %v93 = vpack.c.b16 %v79, %v78
    %v94 = vpack.c.b16 %v81, %v80
    %v95 = vpack.c.b16 %v83, %v82
    %v96 = vpack.c.b16 %v85, %v84
    %v97 = vpack.c.b16 %v87, %v86
    %v98 = vpack.c.b16 %v89, %v88
    %v99 = vpack.c.b16 %v91, %v90
    %108 = vmatprep.subr.bf16.mxu0 0
    %109 = vmatpush1.bf16.msra.mxu0 %v99
    %110 = vmatprep.subr.bf16.mxu0 0
    %111 = vmatpush1.bf16.msra.mxu0 %v98
    %112 = vmatprep.subr.bf16.mxu0 0
    %113 = vmatpush1.bf16.msra.mxu0 %v97
    %114 = vmatprep.subr.bf16.mxu0 0
    %115 = vmatpush1.bf16.msra.mxu0 %v96
    %116 = vmatprep.subr.bf16.mxu0 0
    %117 = vmatpush1.bf16.msra.mxu0 %v95
    %118 = vmatprep.subr.bf16.mxu0 0
    %119 = vmatpush1.bf16.msra.mxu0 %v94
    %120 = vmatprep.subr.bf16.mxu0 0
    %121 = vmatpush1.bf16.msra.mxu0 %v93
    %122 = vmatprep.subr.bf16.mxu0 0
    %123 = vmatpush1.bf16.msra.mxu0 %v92
    %124 = vmatprep.subr.bf16.mxu0 0
    %125 = vmatpush2.bf16.msra.mxu0 0
    %126 = vmatprep.subr.bf16.mxu0 0
    %127 = vmatpush2.bf16.msra.mxu0 0
    %128 = vmatprep.subr.bf16.mxu0 0
    %129 = vmatpush2.bf16.msra.mxu0 0
    %130 = vmatprep.subr.bf16.mxu0 0
    %131 = vmatpush2.bf16.msra.mxu0 0
    %132 = vmatprep.subr.bf16.mxu0 0
    %133 = vmatpush2.bf16.msra.mxu0 0
    %134 = vmatprep.subr.bf16.mxu0 0
    %135 = vmatpush2.bf16.msra.mxu0 0
    %136 = vmatprep.subr.bf16.mxu0 0
    %137 = vmatpush2.bf16.msra.mxu0 0
    %138 = vmatprep.subr.bf16.mxu0 0
    %139 = vmatpush2.bf16.msra.mxu0 0
    %140 = vmatprep.mubr.bf16.mxu0 0
    %141 = vmatmul.mubr.bf16.gmra.mxu0 %v56
    %v142 = vpop.f32.mrf.mxu0
    %v143 = vadd.f32 0.0, %v142
    %v144 = vpop.f32.mrf.mxu0
    %v145 = vpop.f32.mrf.mxu0
    %v146 = vadd.f32 0.0, %v145
    %v147 = vpop.f32.mrf.mxu0
    %148 = vmatprep.mubr.bf16.mxu0 0
    %149 = vmatmul.mubr.bf16.gmra.mxu0 %v57
    %v150 = vpop.f32.mrf.mxu0
    %v151 = vadd.f32 0.0, %v150
    %v152 = vpop.f32.mrf.mxu0
    %v153 = vpop.f32.mrf.mxu0
    %v154 = vadd.f32 0.0, %v153
    %v155 = vpop.f32.mrf.mxu0
    %156 = vdwg.mxu0
    %v157 = vadd.f32 %v24, %v143
    %v158 = vadd.f32 %v25, %v146
    %v159 = vadd.f32 %v26, %v151
    %v160 = vadd.f32 %v27, %v154
    %161 = vst [vmem:[#allocation2] sm:$0xff] %v157
    %162 = vst [vmem:[#allocation2 + $0x8] sm:$0xff] %v158
    %163 = vst [vmem:[#allocation2 + $0x10] sm:$0xff] %v159
    %164 = vst [vmem:[#allocation2 + $0x18] sm:$0xff] %v160
    // Predicated region
    $region18: #{_forward.5} parent=1 // pred_check
      %p165 = pneg %p16
    $region19: #{_forward.5} parent=1 // pred_check_branch
      %167 = sbr.rel (%p165) target = $region21
    $region20: #{_forward.5} parent=1 // pred_region
      %v168 = vld [vmem:[#allocation2] sm:$0xff]
      %v169 = vld [vmem:[#allocation2 + $0x8] sm:$0xff]
      %v170 = vld [vmem:[#allocation2 + $0x10] sm:$0xff]
      %v171 = vld [vmem:[#allocation2 + $0x18] sm:$0xff]
      %v172 = vld [vmem:[%s2] sm:$0x1]
      %v174 = vlaneseq
      %v175 = vshrl.u32 %v174, 7
      %v176 = vsub.s32 0, %v175
      %v177 = vrot.slane %v172, %v176
      %v179 = vadd.f32 %v168, %v177
      %v180 = vadd.f32 %v169, %v177
      %v181 = vadd.f32 %v170, %v177
      %v182 = vadd.f32 %v171, %v177
      %183 = vst [vmem:[#allocation3] sm:$0xff] %v179
      %184 = vst [vmem:[#allocation3 + $0x8] sm:$0xff] %v180
      %185 = vst [vmem:[#allocation3 + $0x10] sm:$0xff] %v181
      %186 = vst [vmem:[#allocation3 + $0x18] sm:$0xff] %v182
    $region21: #{_forward.5} parent=1 // pred_fallthru
      _
    // Predicated region
    $region22: #{_forward.5} parent=1 // pred_check
      _
    $region23: #{_forward.5} parent=1 // pred_check_branch
      %188 = sbr.rel (0) target = $region25
    $region24: #{_forward.5} parent=1 // pred_region
      %s190 = ssub.s32 512, 512
      %191 = vsyncadd [#allocation4], %s190
      %s192 = sshll.u32 [#allocation3], 4
      %s193 = int_to_ptr.vmem [resolvable:$true] %s192
      %198 = dma.vmem_to_hbm [thread:$0]  %s193, 512, %s3, [#allocation4], 128, 128, 8
    $region25: #{_forward.5} parent=1 // pred_fallthru
      _
    // Predicated region
    $region26: #{_forward.5} parent=1 // pred_check
      _
    $region27: #{_forward.5} parent=1 // pred_check_branch
      %200 = sbr.rel (0) target = $region29
    $region28: #{_forward.5} parent=1 // pred_region
      %201 = dma.done [#allocation4], 512
    $region29: #{_forward.5} parent=1 // pred_fallthru
      _
    %202 = vsyncpa [#allocation4], 1

// kernel: _forward.3
$region0: #{_forward.3}
  #allocation0 [shape = 'u32[]', space=smem, size = 0x4, offset = 0x4, fixed_abs, tag = 'smem constant byte address 0x4 - core index']
  #allocation1 [shape = 'u32[144,128]{1,0:T(1,128)}', space=vmem, size = 0x12000, scoped, tag = 'internal scratch']
  #allocation2 [shape = 'f32[8,128]{1,0:T(8,128)}', space=vmem, size = 0x1000, scoped, tag = 'scratch operand']
  #allocation3 [shape = 'f32[8,8,384]{2,1,0:T(8,128)}', space=vmem, size = 0x18000, scoped, tag = 'scratch operand']
  %s0 = inlined_call_operand.vmem [shape: bf16[8,8,128], index: 0, kind: input, shape index: {}]
  %s1 = inlined_call_operand.vmem [shape: f32[8,128], index: 1, kind: input, shape index: {}]
  %s2 = inlined_call_operand.vmem [shape: bf16[128,384], index: 2, kind: input, shape index: {}]
  %s3 = inlined_call_operand.vmem [shape: f32[1,384], index: 3, kind: input, shape index: {}]
  %s4 = inlined_call_operand.vmem [shape: bf16[128,384], index: 4, kind: input, shape index: {}]
  %s5 = inlined_call_operand.vmem [shape: f32[1,128], index: 5, kind: input, shape index: {}]
  %s6 = inlined_call_operand.vmem [shape: bf16[8,8,128], index: 6, kind: output, shape index: {0}]
  %s7 = inlined_call_operand.vmem [shape: f32[8,128], index: 7, kind: output, shape index: {1}]
  %8 = xla_tuple %s6, %s7
  %s9 = sld [smem:[#allocation0]]
  $region57: #{_forward.3} parent=0
    _
  %s11 = ssub.s32 1, %s9
  %s12 = scalar_select 0, %s11, %s9
  // Predicated region
  $region2: #{_forward.3} parent=0 // pred_check
    _
  $region3: #{_forward.3} parent=0 // pred_check_branch
    %14 = sbr.rel (0) target = $region5
  $region4: #{_forward.3} parent=0 // pred_region
    _
  $region5: #{_forward.3} parent=0 // pred_fallthru
    _
  // Predicated region
  $region6: #{_forward.3} parent=0 // pred_check
    _
  $region7: #{_forward.3} parent=0 // pred_check_branch
    %16 = sbr.rel (0) target = $region9
  $region8: #{_forward.3} parent=0 // pred_region
    _
  $region9: #{_forward.3} parent=0 // pred_fallthru
    _
  // Predicated region
  $region10: #{_forward.3} parent=0 // pred_check
    _
  $region11: #{_forward.3} parent=0 // pred_check_branch
    %18 = sbr.rel (0) target = $region13
  $region12: #{_forward.3} parent=0 // pred_region
    _
  $region13: #{_forward.3} parent=0 // pred_fallthru
    _
  // Predicated region
  $region14: #{_forward.3} parent=0 // pred_check
    _
  $region15: #{_forward.3} parent=0 // pred_check_branch
    %20 = sbr.rel (0) target = $region17
  $region16: #{_forward.3} parent=0 // pred_region
    _
  $region17: #{_forward.3} parent=0 // pred_fallthru
    _
  // Predicated region
  $region18: #{_forward.3} parent=0 // pred_check
    _
  $region19: #{_forward.3} parent=0 // pred_check_branch
    %22 = sbr.rel (0) target = $region21
  $region20: #{_forward.3} parent=0 // pred_region
    _
  $region21: #{_forward.3} parent=0 // pred_fallthru
    _
  // Predicated region
  $region22: #{_forward.3} parent=0 // pred_check
    _
  $region23: #{_forward.3} parent=0 // pred_check_branch
    %24 = sbr.rel (0) target = $region25
  $region24: #{_forward.3} parent=0 // pred_region
    _
  $region25: #{_forward.3} parent=0 // pred_fallthru
    _
  %p27 = scmp.eq.s32.totalorder 0, 0
  // Predicated region
  $region26: #{_forward.3} parent=0 // pred_check
    %p28 = pneg %p27
  $region27: #{_forward.3} parent=0 // pred_check_branch
    %30 = sbr.rel (%p28) target = $region29
  $region28: #{_forward.3} parent=0 // pred_region
    %v31 = vld [vmem:[%s1] sm:$0xff]
    %32 = vst [vmem:[#allocation2] sm:$0xff] %v31
  $region29: #{_forward.3} parent=0 // pred_fallthru
    _
  %v33 = vld [vmem:[%s0] sm:$0xf]
  %v34 = vld [vmem:[%s0 + $0x4] sm:$0xf]
  %v35 = vld [vmem:[%s0 + $0x8] sm:$0xf]
  %v36 = vld [vmem:[%s0 + $0xc] sm:$0xf]
  %v37 = vld [vmem:[%s0 + $0x10] sm:$0xf]
  %v38 = vld [vmem:[%s0 + $0x14] sm:$0xf]
  %v39 = vld [vmem:[%s0 + $0x18] sm:$0xf]
  %v40 = vld [vmem:[%s0 + $0x1c] sm:$0xf]
  %v41 = vld [vmem:[%s2] sm:$0xff]
  %v42 = vld [vmem:[%s2 + $0x8] sm:$0xf]
  %v43 = vld [vmem:[%s2 + $0xc] sm:$0xff]
  %v44 = vld [vmem:[%s2 + $0x14] sm:$0xf]
  %v45 = vld [vmem:[%s2 + $0x18] sm:$0xff]
  %v46 = vld [vmem:[%s2 + $0x20] sm:$0xf]
  %v47 = vld [vmem:[%s2 + $0x24] sm:$0xff]
  %v48 = vld [vmem:[%s2 + $0x2c] sm:$0xf]
  %v49 = vld [vmem:[%s2 + $0x30] sm:$0xff]
  %v50 = vld [vmem:[%s2 + $0x38] sm:$0xf]
  %v51 = vld [vmem:[%s2 + $0x3c] sm:$0xff]
  %v52 = vld [vmem:[%s2 + $0x44] sm:$0xf]
  %v53 = vld [vmem:[%s2 + $0x48] sm:$0xff]
  %v54 = vld [vmem:[%s2 + $0x50] sm:$0xf]
  %v55 = vld [vmem:[%s2 + $0x54] sm:$0xff]
  %v56 = vld [vmem:[%s2 + $0x5c] sm:$0xf]
  %v57 = vld [vmem:[%s2 + $0x60] sm:$0xff]
  %v58 = vld [vmem:[%s2 + $0x68] sm:$0xf]
  %v59 = vld [vmem:[%s2 + $0x6c] sm:$0xff]
  %v60 = vld [vmem:[%s2 + $0x74] sm:$0xf]
  %v61 = vld [vmem:[%s2 + $0x78] sm:$0xff]
  %v62 = vld [vmem:[%s2 + $0x80] sm:$0xf]
  %v63 = vld [vmem:[%s2 + $0x84] sm:$0xff]
  %v64 = vld [vmem:[%s2 + $0x8c] sm:$0xf]
  %v65 = vld [vmem:[%s2 + $0x90] sm:$0xff]
  %v66 = vld [vmem:[%s2 + $0x98] sm:$0xf]
  %v67 = vld [vmem:[%s2 + $0x9c] sm:$0xff]
  %v68 = vld [vmem:[%s2 + $0xa4] sm:$0xf]
  %v69 = vld [vmem:[%s2 + $0xa8] sm:$0xff]
  %v70 = vld [vmem:[%s2 + $0xb0] sm:$0xf]
  %v71 = vld [vmem:[%s2 + $0xb4] sm:$0xff]
  %v72 = vld [vmem:[%s2 + $0xbc] sm:$0xf]
  %v73 = vld [vmem:[%s3] sm:$0x7]
  %v75 = vlaneseq
  %v76 = vshrl.u32 %v75, 7
  %v77 = vsub.s32 0, %v76
  %v78 = vrot.slane %v73, %v77
  %v79 = vlaneseq
  %v80 = vshrl.u32 %v79, 7
  %v81 = vsub.s32 1, %v80
  %v82 = vrot.slane %v73, %v81
  %v83 = vlaneseq
  %v84 = vshrl.u32 %v83, 7
  %v85 = vsub.s32 2, %v84
  %v86 = vrot.slane %v73, %v85
  %v98 = vunpack.c.l.b16 %v33
  %v99 = vunpack.c.l.b16 %v34
  %v100 = vunpack.c.l.b16 %v35
  %v101 = vunpack.c.l.b16 %v36
  %v102 = vunpack.c.l.b16 %v37
  %v103 = vunpack.c.l.b16 %v38
  %v104 = vunpack.c.l.b16 %v39
  %v105 = vunpack.c.l.b16 %v40
  %v106 = vpack.c.b16 %v99, %v98
  %v107 = vpack.c.b16 %v101, %v100
  %v108 = vpack.c.b16 %v103, %v102
  %v109 = vpack.c.b16 %v105, %v104
  %v146 = vunpack.c.l.b16 %v41
  %v147 = vunpack.c.h.b16 %v41
  %v148 = vunpack.c.l.b16 %v42
  %v149 = vunpack.c.l.b16 %v43
  %v150 = vunpack.c.h.b16 %v43
  %v151 = vunpack.c.l.b16 %v44
  %v152 = vunpack.c.l.b16 %v45
  %v153 = vunpack.c.h.b16 %v45
  %v154 = vunpack.c.l.b16 %v46
  %v155 = vunpack.c.l.b16 %v47
  %v156 = vunpack.c.h.b16 %v47
  %v157 = vunpack.c.l.b16 %v48
  %v158 = vunpack.c.l.b16 %v49
  %v159 = vunpack.c.h.b16 %v49
  %v160 = vunpack.c.l.b16 %v50
  %v161 = vunpack.c.l.b16 %v51
  %v162 = vunpack.c.h.b16 %v51
  %v163 = vunpack.c.l.b16 %v52
  %v164 = vunpack.c.l.b16 %v53
  %v165 = vunpack.c.h.b16 %v53
  %v166 = vunpack.c.l.b16 %v54
  %v167 = vunpack.c.l.b16 %v55
  %v168 = vunpack.c.h.b16 %v55
  %v169 = vunpack.c.l.b16 %v56
  %v170 = vunpack.c.l.b16 %v57
  %v171 = vunpack.c.h.b16 %v57
  %v172 = vunpack.c.l.b16 %v58
  %v173 = vunpack.c.l.b16 %v59
  %v174 = vunpack.c.h.b16 %v59
  %v175 = vunpack.c.l.b16 %v60
  %v176 = vunpack.c.l.b16 %v61
  %v177 = vunpack.c.h.b16 %v61
  %v178 = vunpack.c.l.b16 %v62
  %v179 = vunpack.c.l.b16 %v63
  %v180 = vunpack.c.h.b16 %v63
  %v181 = vunpack.c.l.b16 %v64
  %v182 = vunpack.c.l.b16 %v65
  %v183 = vunpack.c.h.b16 %v65
  %v184 = vunpack.c.l.b16 %v66
  %v185 = vunpack.c.l.b16 %v67
  %v186 = vunpack.c.h.b16 %v67
  %v187 = vunpack.c.l.b16 %v68
  %v188 = vunpack.c.l.b16 %v69
  %v189 = vunpack.c.h.b16 %v69
  %v190 = vunpack.c.l.b16 %v70
  %v191 = vunpack.c.l.b16 %v71
  %v192 = vunpack.c.h.b16 %v71
  %v193 = vunpack.c.l.b16 %v72
  %v194 = vpack.c.b16 %v149, %v146
  %v195 = vpack.c.b16 %v150, %v147
  %v196 = vpack.c.b16 %v151, %v148
  %v197 = vpack.c.b16 %v155, %v152
  %v198 = vpack.c.b16 %v156, %v153
  %v199 = vpack.c.b16 %v157, %v154
  %v200 = vpack.c.b16 %v161, %v158
  %v201 = vpack.c.b16 %v162, %v159
  %v202 = vpack.c.b16 %v163, %v160
  %v203 = vpack.c.b16 %v167, %v164
  %v204 = vpack.c.b16 %v168, %v165
  %v205 = vpack.c.b16 %v169, %v166
  %v206 = vpack.c.b16 %v173, %v170
  %v207 = vpack.c.b16 %v174, %v171
  %v208 = vpack.c.b16 %v175, %v172
  %v209 = vpack.c.b16 %v179, %v176
  %v210 = vpack.c.b16 %v180, %v177
  %v211 = vpack.c.b16 %v181, %v178
  %v212 = vpack.c.b16 %v185, %v182
  %v213 = vpack.c.b16 %v186, %v183
  %v214 = vpack.c.b16 %v187, %v184
  %v215 = vpack.c.b16 %v191, %v188
  %v216 = vpack.c.b16 %v192, %v189
  %v217 = vpack.c.b16 %v193, %v190
  %242 = vmatprep.subr.bf16.mxu0 %v216
  %243 = vmatpush1.bf16.msra.mxu0 %v215
  %244 = vmatprep.subr.bf16.mxu0 %v213
  %245 = vmatpush1.bf16.msra.mxu0 %v212
  %246 = vmatprep.subr.bf16.mxu0 %v210
  %247 = vmatpush1.bf16.msra.mxu0 %v209
  %248 = vmatprep.subr.bf16.mxu0 %v207
  %249 = vmatpush1.bf16.msra.mxu0 %v206
  %250 = vmatprep.subr.bf16.mxu0 %v204
  %251 = vmatpush1.bf16.msra.mxu0 %v203
  %252 = vmatprep.subr.bf16.mxu0 %v201
  %253 = vmatpush1.bf16.msra.mxu0 %v200
  %254 = vmatprep.subr.bf16.mxu0 %v198
  %255 = vmatpush1.bf16.msra.mxu0 %v197
  %256 = vmatprep.subr.bf16.mxu0 %v195
  %257 = vmatpush1.bf16.msra.mxu0 %v194
  %258 = vmatprep.subr.bf16.mxu0 0
  %259 = vmatpush2.bf16.msra.mxu0 0
  %260 = vmatprep.subr.bf16.mxu0 0
  %261 = vmatpush2.bf16.msra.mxu0 0
  %262 = vmatprep.subr.bf16.mxu0 0
  %263 = vmatpush2.bf16.msra.mxu0 0
  %264 = vmatprep.subr.bf16.mxu0 0
  %265 = vmatpush2.bf16.msra.mxu0 0
  %266 = vmatprep.subr.bf16.mxu0 0
  %267 = vmatpush2.bf16.msra.mxu0 0
  %268 = vmatprep.subr.bf16.mxu0 0
  %269 = vmatpush2.bf16.msra.mxu0 0
  %270 = vmatprep.subr.bf16.mxu0 0
  %271 = vmatpush2.bf16.msra.mxu0 0
  %272 = vmatprep.subr.bf16.mxu0 0
  %273 = vmatpush2.bf16.msra.mxu0 0
  %274 = vmatprep.mubr.bf16.mxu0 0
  %275 = vmatmul.mubr.bf16.gmra.mxu0 %v106
  %v276 = vpop.f32.mrf.mxu0
  %v277 = vadd.f32 %v78, %v276
  %v278 = vpop.f32.mrf.mxu0
  %v279 = vadd.f32 %v82, %v278
  %v280 = vpop.f32.mrf.mxu0
  %v281 = vadd.f32 %v78, %v280
  %v282 = vpop.f32.mrf.mxu0
  %v283 = vadd.f32 %v82, %v282
  %284 = vmatprep.mubr.bf16.mxu0 0
  %285 = vmatmul.mubr.bf16.gmra.mxu0 %v107
  %v286 = vpop.f32.mrf.mxu0
  %v287 = vadd.f32 %v78, %v286
  %v288 = vpop.f32.mrf.mxu0
  %v289 = vadd.f32 %v82, %v288
  %v290 = vpop.f32.mrf.mxu0
  %v291 = vadd.f32 %v78, %v290
  %v292 = vpop.f32.mrf.mxu0
  %v293 = vadd.f32 %v82, %v292
  %294 = vmatprep.mubr.bf16.mxu0 0
  %295 = vmatmul.mubr.bf16.gmra.mxu0 %v108
  %v296 = vpop.f32.mrf.mxu0
  %v297 = vadd.f32 %v78, %v296
  %v298 = vpop.f32.mrf.mxu0
  %v299 = vadd.f32 %v82, %v298
  %v300 = vpop.f32.mrf.mxu0
  %v301 = vadd.f32 %v78, %v300
  %v302 = vpop.f32.mrf.mxu0
  %v303 = vadd.f32 %v82, %v302
  %304 = vmatprep.mubr.bf16.mxu0 0
  %305 = vmatmul.mubr.bf16.gmra.mxu0 %v109
  %v306 = vpop.f32.mrf.mxu0
  %v307 = vadd.f32 %v78, %v306
  %v308 = vpop.f32.mrf.mxu0
  %v309 = vadd.f32 %v82, %v308
  %v310 = vpop.f32.mrf.mxu0
  %v311 = vadd.f32 %v78, %v310
  %v312 = vpop.f32.mrf.mxu0
  %v313 = vadd.f32 %v82, %v312
  %314 = vdwg.mxu0
  %315 = vmatprep.subr.bf16.mxu0 0
  %316 = vmatpush1.bf16.msra.mxu0 %v217
  %317 = vmatprep.subr.bf16.mxu0 0
  %318 = vmatpush1.bf16.msra.mxu0 %v214
  %319 = vmatprep.subr.bf16.mxu0 0
  %320 = vmatpush1.bf16.msra.mxu0 %v211
  %321 = vmatprep.subr.bf16.mxu0 0
  %322 = vmatpush1.bf16.msra.mxu0 %v208
  %323 = vmatprep.subr.bf16.mxu0 0
  %324 = vmatpush1.bf16.msra.mxu0 %v205
  %325 = vmatprep.subr.bf16.mxu0 0
  %326 = vmatpush1.bf16.msra.mxu0 %v202
  %327 = vmatprep.subr.bf16.mxu0 0
  %328 = vmatpush1.bf16.msra.mxu0 %v199
  %329 = vmatprep.subr.bf16.mxu0 0
  %330 = vmatpush1.bf16.msra.mxu0 %v196
  %331 = vmatprep.subr.bf16.mxu0 0
  %332 = vmatpush2.bf16.msra.mxu0 0
  %333 = vmatprep.subr.bf16.mxu0 0
  %334 = vmatpush2.bf16.msra.mxu0 0
  %335 = vmatprep.subr.bf16.mxu0 0
  %336 = vmatpush2.bf16.msra.mxu0 0
  %337 = vmatprep.subr.bf16.mxu0 0
  %338 = vmatpush2.bf16.msra.mxu0 0
  %339 = vmatprep.subr.bf16.mxu0 0
  %340 = vmatpush2.bf16.msra.mxu0 0
  %341 = vmatprep.subr.bf16.mxu0 0
  %342 = vmatpush2.bf16.msra.mxu0 0
  %343 = vmatprep.subr.bf16.mxu0 0
  %344 = vmatpush2.bf16.msra.mxu0 0
  %345 = vmatprep.subr.bf16.mxu0 0
  %346 = vmatpush2.bf16.msra.mxu0 0
  %347 = vmatprep.mubr.bf16.mxu0 0
  %348 = vmatmul.mubr.bf16.gmra.mxu0 %v106
  %v349 = vpop.f32.mrf.mxu0
  %v350 = vadd.f32 %v86, %v349
  %v351 = vpop.f32.mrf.mxu0
  %v352 = vpop.f32.mrf.mxu0
  %v353 = vadd.f32 %v86, %v352
  %v354 = vpop.f32.mrf.mxu0
  %355 = vmatprep.mubr.bf16.mxu0 0
  %356 = vmatmul.mubr.bf16.gmra.mxu0 %v107
  %v357 = vpop.f32.mrf.mxu0
  %v358 = vadd.f32 %v86, %v357
  %v359 = vpop.f32.mrf.mxu0
  %v360 = vpop.f32.mrf.mxu0
  %v361 = vadd.f32 %v86, %v360
  %v362 = vpop.f32.mrf.mxu0
  %363 = vmatprep.mubr.bf16.mxu0 0
  %364 = vmatmul.mubr.bf16.gmra.mxu0 %v108
  %v365 = vpop.f32.mrf.mxu0
  %v366 = vadd.f32 %v86, %v365
  %v367 = vpop.f32.mrf.mxu0
  %v368 = vpop.f32.mrf.mxu0
  %v369 = vadd.f32 %v86, %v368
  %v370 = vpop.f32.mrf.mxu0
  %371 = vmatprep.mubr.bf16.mxu0 0
  %372 = vmatmul.mubr.bf16.gmra.mxu0 %v109
  %v373 = vpop.f32.mrf.mxu0
  %v374 = vadd.f32 %v86, %v373
  %v375 = vpop.f32.mrf.mxu0
  %v376 = vpop.f32.mrf.mxu0
  %v377 = vadd.f32 %v86, %v376
  %v378 = vpop.f32.mrf.mxu0
  %379 = vdwg.mxu0
  %380 = vst [vmem:[#allocation3] sm:$0xff] %v277
  %381 = vst [vmem:[#allocation3 + $0x8] sm:$0xff] %v279
  %382 = vst [vmem:[#allocation3 + $0x10] sm:$0xff] %v350
  %383 = vst [vmem:[#allocation3 + $0x18] sm:$0xff] %v281
  %384 = vst [vmem:[#allocation3 + $0x20] sm:$0xff] %v283
  %385 = vst [vmem:[#allocation3 + $0x28] sm:$0xff] %v353
  %386 = vst [vmem:[#allocation3 + $0x30] sm:$0xff] %v287
  %387 = vst [vmem:[#allocation3 + $0x38] sm:$0xff] %v289
  %388 = vst [vmem:[#allocation3 + $0x40] sm:$0xff] %v358
  %389 = vst [vmem:[#allocation3 + $0x48] sm:$0xff] %v291
  %390 = vst [vmem:[#allocation3 + $0x50] sm:$0xff] %v293
  %391 = vst [vmem:[#allocation3 + $0x58] sm:$0xff] %v361
  %392 = vst [vmem:[#allocation3 + $0x60] sm:$0xff] %v297
  %393 = vst [vmem:[#allocation3 + $0x68] sm:$0xff] %v299
  %394 = vst [vmem:[#allocation3 + $0x70] sm:$0xff] %v366
  %395 = vst [vmem:[#allocation3 + $0x78] sm:$0xff] %v301
  %396 = vst [vmem:[#allocation3 + $0x80] sm:$0xff] %v303
  %397 = vst [vmem:[#allocation3 + $0x88] sm:$0xff] %v369
  %398 = vst [vmem:[#allocation3 + $0x90] sm:$0xff] %v307
  %399 = vst [vmem:[#allocation3 + $0x98] sm:$0xff] %v309
  %400 = vst [vmem:[#allocation3 + $0xa0] sm:$0xff] %v374
  %401 = vst [vmem:[#allocation3 + $0xa8] sm:$0xff] %v311
  %402 = vst [vmem:[#allocation3 + $0xb0] sm:$0xff] %v313
  %403 = vst [vmem:[#allocation3 + $0xb8] sm:$0xff] %v377
  %v404 = vld [vmem:[%s4] sm:$0xff]
  %v405 = vld [vmem:[%s4 + $0x8] sm:$0xf]
  %v406 = vld [vmem:[%s4 + $0xc] sm:$0xff]
  %v407 = vld [vmem:[%s4 + $0x14] sm:$0xf]
  %v408 = vld [vmem:[%s4 + $0x18] sm:$0xff]
  %v409 = vld [vmem:[%s4 + $0x20] sm:$0xf]
  %v410 = vld [vmem:[%s4 + $0x24] sm:$0xff]
  %v411 = vld [vmem:[%s4 + $0x2c] sm:$0xf]
  %v412 = vld [vmem:[%s4 + $0x30] sm:$0xff]
  %v413 = vld [vmem:[%s4 + $0x38] sm:$0xf]
  %v414 = vld [vmem:[%s4 + $0x3c] sm:$0xff]
  %v415 = vld [vmem:[%s4 + $0x44] sm:$0xf]
  %v416 = vld [vmem:[%s4 + $0x48] sm:$0xff]
  %v417 = vld [vmem:[%s4 + $0x50] sm:$0xf]
  %v418 = vld [vmem:[%s4 + $0x54] sm:$0xff]
  %v419 = vld [vmem:[%s4 + $0x5c] sm:$0xf]
  %v420 = vld [vmem:[%s4 + $0x60] sm:$0xff]
  %v421 = vld [vmem:[%s4 + $0x68] sm:$0xf]
  %v422 = vld [vmem:[%s4 + $0x6c] sm:$0xff]
  %v423 = vld [vmem:[%s4 + $0x74] sm:$0xf]
  %v424 = vld [vmem:[%s4 + $0x78] sm:$0xff]
  %v425 = vld [vmem:[%s4 + $0x80] sm:$0xf]
  %v426 = vld [vmem:[%s4 + $0x84] sm:$0xff]
  %v427 = vld [vmem:[%s4 + $0x8c] sm:$0xf]
  %v428 = vld [vmem:[%s4 + $0x90] sm:$0xff]
  %v429 = vld [vmem:[%s4 + $0x98] sm:$0xf]
  %v430 = vld [vmem:[%s4 + $0x9c] sm:$0xff]
  %v431 = vld [vmem:[%s4 + $0xa4] sm:$0xf]
  %v432 = vld [vmem:[%s4 + $0xa8] sm:$0xff]
  %v433 = vld [vmem:[%s4 + $0xb0] sm:$0xf]
  %v434 = vld [vmem:[%s4 + $0xb4] sm:$0xff]
  %v435 = vld [vmem:[%s4 + $0xbc] sm:$0xf]
  %v436 = vld [vmem:[%s5] sm:$0x1]
  %v438 = vlaneseq
  %v439 = vshrl.u32 %v438, 7
  %v440 = vsub.s32 0, %v439
  %v441 = vrot.slane %v436, %v440
  loop: start=0, step=1, limit=2
  $region30: #{_forward.3} parent=0 // loop_pre_header
    _
  $region31: #{_forward.3} parent=0 // loop_header
    %s444 = sphi 0, %s448
    %p445 = scmp.ge.s32.totalorder %s444, 2
  $region32: #{_forward.3} parent=0 // loop_header_branch
    %447 = sbr.rel (%p445) target = $region36
  $region33: #{_forward.3} parent=0 // loop_body
    %s449 = smul.u32 %s444, 4
    %v450 = vld [vmem:[#allocation2] sm:$0xff]
    %s451 = smul.u32 %s449, 3
    %s452 = smul.addr %s451, 8
    %s453 = scalar_lea.vmem [#allocation3], %s452
    %v454 = vld [vmem:[%s453] sm:$0xff]
    %v455 = vld [vmem:[%s453 + $0x8] sm:$0xff]
    %v456 = vld [vmem:[%s453 + $0x10] sm:$0xff]
    %v457 = vpack.c.bf16 %v450, %v450
    %v490 = vunpack.c.l.b16 %v404
    %v491 = vunpack.c.h.b16 %v404
    %v492 = vunpack.c.l.b16 %v405
    %v493 = vunpack.c.l.b16 %v406
    %v494 = vunpack.c.h.b16 %v406
    %v495 = vunpack.c.l.b16 %v407
    %v496 = vunpack.c.l.b16 %v408
    %v497 = vunpack.c.h.b16 %v408
    %v498 = vunpack.c.l.b16 %v409
    %v499 = vunpack.c.l.b16 %v410
    %v500 = vunpack.c.h.b16 %v410
    %v501 = vunpack.c.l.b16 %v411
    %v502 = vunpack.c.l.b16 %v412
    %v503 = vunpack.c.h.b16 %v412
    %v504 = vunpack.c.l.b16 %v413
    %v505 = vunpack.c.l.b16 %v414
    %v506 = vunpack.c.h.b16 %v414
    %v507 = vunpack.c.l.b16 %v415
    %v508 = vunpack.c.l.b16 %v416
    %v509 = vunpack.c.h.b16 %v416
    %v510 = vunpack.c.l.b16 %v417
    %v511 = vunpack.c.l.b16 %v418
    %v512 = vunpack.c.h.b16 %v418
    %v513 = vunpack.c.l.b16 %v419
    %v514 = vunpack.c.l.b16 %v420
    %v515 = vunpack.c.h.b16 %v420
    %v516 = vunpack.c.l.b16 %v421
    %v517 = vunpack.c.l.b16 %v422
    %v518 = vunpack.c.h.b16 %v422
    %v519 = vunpack.c.l.b16 %v423
    %v520 = vunpack.c.l.b16 %v424
    %v521 = vunpack.c.h.b16 %v424
    %v522 = vunpack.c.l.b16 %v425
    %v523 = vunpack.c.l.b16 %v426
    %v524 = vunpack.c.h.b16 %v426
    %v525 = vunpack.c.l.b16 %v427
    %v526 = vunpack.c.l.b16 %v428
    %v527 = vunpack.c.h.b16 %v428
    %v528 = vunpack.c.l.b16 %v429
    %v529 = vunpack.c.l.b16 %v430
    %v530 = vunpack.c.h.b16 %v430
    %v531 = vunpack.c.l.b16 %v431
    %v532 = vunpack.c.l.b16 %v432
    %v533 = vunpack.c.h.b16 %v432
    %v534 = vunpack.c.l.b16 %v433
    %v535 = vunpack.c.l.b16 %v434
    %v536 = vunpack.c.h.b16 %v434
    %v537 = vunpack.c.l.b16 %v435
    %v538 = vpack.c.b16 %v493, %v490
    %v539 = vpack.c.b16 %v494, %v491
    %v540 = vpack.c.b16 %v495, %v492
    %v541 = vpack.c.b16 %v499, %v496
    %v542 = vpack.c.b16 %v500, %v497
    %v543 = vpack.c.b16 %v501, %v498
    %v544 = vpack.c.b16 %v505, %v502
    %v545 = vpack.c.b16 %v506, %v503
    %v546 = vpack.c.b16 %v507, %v504
    %v547 = vpack.c.b16 %v511, %v508
    %v548 = vpack.c.b16 %v512, %v509
    %v549 = vpack.c.b16 %v513, %v510
    %v550 = vpack.c.b16 %v517, %v514
    %v551 = vpack.c.b16 %v518, %v515
    %v552 = vpack.c.b16 %v519, %v516
    %v553 = vpack.c.b16 %v523, %v520
    %v554 = vpack.c.b16 %v524, %v521
    %v555 = vpack.c.b16 %v525, %v522
    %v556 = vpack.c.b16 %v529, %v526
    %v557 = vpack.c.b16 %v530, %v527
    %v558 = vpack.c.b16 %v531, %v528
    %v559 = vpack.c.b16 %v535, %v532
    %v560 = vpack.c.b16 %v536, %v533
    %v561 = vpack.c.b16 %v537, %v534
    %586 = vmatprep.subr.bf16.mxu0 %v560
    %587 = vmatpush1.bf16.msra.mxu0 %v559
    %588 = vmatprep.subr.bf16.mxu0 %v557
    %589 = vmatpush1.bf16.msra.mxu0 %v556
    %590 = vmatprep.subr.bf16.mxu0 %v554
    %591 = vmatpush1.bf16.msra.mxu0 %v553
    %592 = vmatprep.subr.bf16.mxu0 %v551
    %593 = vmatpush1.bf16.msra.mxu0 %v550
    %594 = vmatprep.subr.bf16.mxu0 %v548
    %595 = vmatpush1.bf16.msra.mxu0 %v547
    %596 = vmatprep.subr.bf16.mxu0 %v545
    %597 = vmatpush1.bf16.msra.mxu0 %v544
    %598 = vmatprep.subr.bf16.mxu0 %v542
    %599 = vmatpush1.bf16.msra.mxu0 %v541
    %600 = vmatprep.subr.bf16.mxu0 %v539
    %601 = vmatpush1.bf16.msra.mxu0 %v538
    %602 = vmatprep.subr.bf16.mxu0 0
    %603 = vmatpush2.bf16.msra.mxu0 0
    %604 = vmatprep.subr.bf16.mxu0 0
    %605 = vmatpush2.bf16.msra.mxu0 0
    %606 = vmatprep.subr.bf16.mxu0 0
    %607 = vmatpush2.bf16.msra.mxu0 0
    %608 = vmatprep.subr.bf16.mxu0 0
    %609 = vmatpush2.bf16.msra.mxu0 0
    %610 = vmatprep.subr.bf16.mxu0 0
    %611 = vmatpush2.bf16.msra.mxu0 0
    %612 = vmatprep.subr.bf16.mxu0 0
    %613 = vmatpush2.bf16.msra.mxu0 0
    %614 = vmatprep.subr.bf16.mxu0 0
    %615 = vmatpush2.bf16.msra.mxu0 0
    %616 = vmatprep.subr.bf16.mxu0 0
    %617 = vmatpush2.bf16.msra.mxu0 0
    %618 = vmatprep.mubr.bf16.mxu0 0
    %619 = vmatmul.mubr.bf16.gmra.mxu0 %v457
    %v620 = vpop.f32.mrf.mxu0
    %v621 = vadd.f32 0.0, %v620
    %v622 = vpop.f32.mrf.mxu0
    %v623 = vadd.f32 0.0, %v622
    %v624 = vpop.f32.mrf.mxu0
    %v625 = vpop.f32.mrf.mxu0
    %626 = vdwg.mxu0
    %627 = vmatprep.subr.bf16.mxu0 0
    %628 = vmatpush1.bf16.msra.mxu0 %v561
    %629 = vmatprep.subr.bf16.mxu0 0
    %630 = vmatpush1.bf16.msra.mxu0 %v558
    %631 = vmatprep.subr.bf16.mxu0 0
    %632 = vmatpush1.bf16.msra.mxu0 %v555
    %633 = vmatprep.subr.bf16.mxu0 0
    %634 = vmatpush1.bf16.msra.mxu0 %v552
    %635 = vmatprep.subr.bf16.mxu0 0
    %636 = vmatpush1.bf16.msra.mxu0 %v549
    %637 = vmatprep.subr.bf16.mxu0 0
    %638 = vmatpush1.bf16.msra.mxu0 %v546
    %639 = vmatprep.subr.bf16.mxu0 0
    %640 = vmatpush1.bf16.msra.mxu0 %v543
    %641 = vmatprep.subr.bf16.mxu0 0
    %642 = vmatpush1.bf16.msra.mxu0 %v540
    %643 = vmatprep.subr.bf16.mxu0 0
    %644 = vmatpush2.bf16.msra.mxu0 0
    %645 = vmatprep.subr.bf16.mxu0 0
    %646 = vmatpush2.bf16.msra.mxu0 0
    %647 = vmatprep.subr.bf16.mxu0 0
    %648 = vmatpush2.bf16.msra.mxu0 0
    %649 = vmatprep.subr.bf16.mxu0 0
    %650 = vmatpush2.bf16.msra.mxu0 0
    %651 = vmatprep.subr.bf16.mxu0 0
    %652 = vmatpush2.bf16.msra.mxu0 0
    %653 = vmatprep.subr.bf16.mxu0 0
    %654 = vmatpush2.bf16.msra.mxu0 0
    %655 = vmatprep.subr.bf16.mxu0 0
    %656 = vmatpush2.bf16.msra.mxu0 0
    %657 = vmatprep.subr.bf16.mxu0 0
    %658 = vmatpush2.bf16.msra.mxu0 0
    %659 = vmatprep.mubr.bf16.mxu0 0
    %660 = vmatmul.mubr.bf16.gmra.mxu0 %v457
    %v661 = vpop.f32.mrf.mxu0
    %v662 = vadd.f32 0.0, %v661
    %v663 = vpop.f32.mrf.mxu0
    %v664 = vpop.f32.mrf.mxu0
    %v665 = vpop.f32.mrf.mxu0
    %666 = vdwg.mxu0
    %v667 = vadd.f32 %v454, %v621
    %v668 = vadd.f32 %v455, %v623
    %v669 = vpack.c.bf16 %v667, %v667
    %v670 = vpack.c.bf16 %v668, %v668
    %v671 = vxor.u32 %v669, 2147516416
    %v673 = vmul.bf16 %v671, 1069105081
    %v674 = vpow.bf16.pop %v673
    %v675 = vadd.bf16 %v674, 1065369472
    %v676 = vrcp.bf16.pop %v675
    %v677 = vmul.bf16 1065369472, %v676
    %v678 = vxor.u32 %v670, 2147516416
    %v680 = vmul.bf16 %v678, 1069105081
    %v681 = vpow.bf16.pop %v680
    %v682 = vadd.bf16 %v681, 1065369472
    %v683 = vrcp.bf16.pop %v682
    %v684 = vmul.bf16 1065369472, %v683
    %v685 = vadd.f32 %v662, %v441
    %v686 = vpack.c.bf16 %v685, %v685
    %v687 = vpack.c.bf16 %v456, %v456
    %v688 = vmul.bf16 %v677, %v686
    %v689 = vadd.bf16 %v687, %v688
    %v690 = vtanh.bf16.pop %v689
    %v691 = vunpack.c.l.bf16 %v690
    %v692 = vunpack.c.l.bf16 %v684
    %v693 = vsub.f32 %v450, %v691
    %v694 = vmul.f32 %v692, %v693
    %v695 = vadd.f32 %v691, %v694
    %v696 = vpack.c.bf16 %v695, %v695
    %s697 = smul.addr %s449, 4
    %s698 = scalar_lea.vmem %s6, %s697
    %699 = vst [vmem:[%s698] sm:$0xf] %v696
    %700 = vst [vmem:[#allocation2] sm:$0xff] %v695
    %s701 = sadd.s32 %s449, 1
    %v702 = vld [vmem:[#allocation2] sm:$0xff]
    %s703 = smul.u32 %s701, 3
    %s704 = smul.addr %s703, 8
    %s705 = scalar_lea.vmem [#allocation3], %s704
    %v706 = vld [vmem:[%s705] sm:$0xff]
    %v707 = vld [vmem:[%s705 + $0x8] sm:$0xff]
    %v708 = vld [vmem:[%s705 + $0x10] sm:$0xff]
    %v709 = vpack.c.bf16 %v702, %v702
    %710 = vmatprep.subr.bf16.mxu0 %v560
    %711 = vmatpush1.bf16.msra.mxu0 %v559
    %712 = vmatprep.subr.bf16.mxu0 %v557
    %713 = vmatpush1.bf16.msra.mxu0 %v556
    %714 = vmatprep.subr.bf16.mxu0 %v554
    %715 = vmatpush1.bf16.msra.mxu0 %v553
    %716 = vmatprep.subr.bf16.mxu0 %v551
    %717 = vmatpush1.bf16.msra.mxu0 %v550
    %718 = vmatprep.subr.bf16.mxu0 %v548
    %719 = vmatpush1.bf16.msra.mxu0 %v547
    %720 = vmatprep.subr.bf16.mxu0 %v545
    %721 = vmatpush1.bf16.msra.mxu0 %v544
    %722 = vmatprep.subr.bf16.mxu0 %v542
    %723 = vmatpush1.bf16.msra.mxu0 %v541
    %724 = vmatprep.subr.bf16.mxu0 %v539
    %725 = vmatpush1.bf16.msra.mxu0 %v538
    %726 = vmatprep.subr.bf16.mxu0 0
    %727 = vmatpush2.bf16.msra.mxu0 0
    %728 = vmatprep.subr.bf16.mxu0 0
    %729 = vmatpush2.bf16.msra.mxu0 0
    %730 = vmatprep.subr.bf16.mxu0 0
    %731 = vmatpush2.bf16.msra.mxu0 0
    %732 = vmatprep.subr.bf16.mxu0 0
    %733 = vmatpush2.bf16.msra.mxu0 0
    %734 = vmatprep.subr.bf16.mxu0 0
    %735 = vmatpush2.bf16.msra.mxu0 0
    %736 = vmatprep.subr.bf16.mxu0 0
    %737 = vmatpush2.bf16.msra.mxu0 0
    %738 = vmatprep.subr.bf16.mxu0 0
    %739 = vmatpush2.bf16.msra.mxu0 0
    %740 = vmatprep.subr.bf16.mxu0 0
    %741 = vmatpush2.bf16.msra.mxu0 0
    %742 = vmatprep.mubr.bf16.mxu0 0
    %743 = vmatmul.mubr.bf16.gmra.mxu0 %v709
    %v744 = vpop.f32.mrf.mxu0
    %v745 = vadd.f32 0.0, %v744
    %v746 = vpop.f32.mrf.mxu0
    %v747 = vadd.f32 0.0, %v746
    %v748 = vpop.f32.mrf.mxu0
    %v749 = vpop.f32.mrf.mxu0
    %750 = vdwg.mxu0
    %751 = vmatprep.subr.bf16.mxu0 0
    %752 = vmatpush1.bf16.msra.mxu0 %v561
    %753 = vmatprep.subr.bf16.mxu0 0
    %754 = vmatpush1.bf16.msra.mxu0 %v558
    %755 = vmatprep.subr.bf16.mxu0 0
    %756 = vmatpush1.bf16.msra.mxu0 %v555
    %757 = vmatprep.subr.bf16.mxu0 0
    %758 = vmatpush1.bf16.msra.mxu0 %v552
    %759 = vmatprep.subr.bf16.mxu0 0
    %760 = vmatpush1.bf16.msra.mxu0 %v549
    %761 = vmatprep.subr.bf16.mxu0 0
    %762 = vmatpush1.bf16.msra.mxu0 %v546
    %763 = vmatprep.subr.bf16.mxu0 0
    %764 = vmatpush1.bf16.msra.mxu0 %v543
    %765 = vmatprep.subr.bf16.mxu0 0
    %766 = vmatpush1.bf16.msra.mxu0 %v540
    %767 = vmatprep.subr.bf16.mxu0 0
    %768 = vmatpush2.bf16.msra.mxu0 0
    %769 = vmatprep.subr.bf16.mxu0 0
    %770 = vmatpush2.bf16.msra.mxu0 0
    %771 = vmatprep.subr.bf16.mxu0 0
    %772 = vmatpush2.bf16.msra.mxu0 0
    %773 = vmatprep.subr.bf16.mxu0 0
    %774 = vmatpush2.bf16.msra.mxu0 0
    %775 = vmatprep.subr.bf16.mxu0 0
    %776 = vmatpush2.bf16.msra.mxu0 0
    %777 = vmatprep.subr.bf16.mxu0 0
    %778 = vmatpush2.bf16.msra.mxu0 0
    %779 = vmatprep.subr.bf16.mxu0 0
    %780 = vmatpush2.bf16.msra.mxu0 0
    %781 = vmatprep.subr.bf16.mxu0 0
    %782 = vmatpush2.bf16.msra.mxu0 0
    %783 = vmatprep.mubr.bf16.mxu0 0
    %784 = vmatmul.mubr.bf16.gmra.mxu0 %v709
    %v785 = vpop.f32.mrf.mxu0
    %v786 = vadd.f32 0.0, %v785
    %v787 = vpop.f32.mrf.mxu0
    %v788 = vpop.f32.mrf.mxu0
    %v789 = vpop.f32.mrf.mxu0
    %790 = vdwg.mxu0
    %v791 = vadd.f32 %v706, %v745
    %v792 = vadd.f32 %v707, %v747
    %v793 = vpack.c.bf16 %v791, %v791
    %v794 = vpack.c.bf16 %v792, %v792
    %v795 = vxor.u32 %v793, 2147516416
    %v797 = vmul.bf16 %v795, 1069105081
    %v798 = vpow.bf16.pop %v797
    %v799 = vadd.bf16 %v798, 1065369472
    %v800 = vrcp.bf16.pop %v799
    %v801 = vmul.bf16 1065369472, %v800
    %v802 = vxor.u32 %v794, 2147516416
    %v804 = vmul.bf16 %v802, 1069105081
    %v805 = vpow.bf16.pop %v804
    %v806 = vadd.bf16 %v805, 1065369472
    %v807 = vrcp.bf16.pop %v806
    %v808 = vmul.bf16 1065369472, %v807
    %v809 = vadd.f32 %v786, %v441
    %v810 = vpack.c.bf16 %v809, %v809
    %v811 = vpack.c.bf16 %v708, %v708
    %v812 = vmul.bf16 %v801, %v810
    %v813 = vadd.bf16 %v811, %v812
    %v814 = vtanh.bf16.pop %v813
    %v815 = vunpack.c.l.bf16 %v814
    %v816 = vunpack.c.l.bf16 %v808
    %v817 = vsub.f32 %v702, %v815
    %v818 = vmul.f32 %v816, %v817
    %v819 = vadd.f32 %v815, %v818
    %v820 = vpack.c.bf16 %v819, %v819
    %s821 = smul.addr %s701, 4
    %s822 = scalar_lea.vmem %s6, %s821
    %823 = vst [vmem:[%s822] sm:$0xf] %v820
    %824 = vst [vmem:[#allocation2] sm:$0xff] %v819
    %s825 = sadd.s32 %s449, 2
    %v826 = vld [vmem:[#allocation2] sm:$0xff]
    %s827 = smul.u32 %s825, 3
    %s828 = smul.addr %s827, 8
    %s829 = scalar_lea.vmem [#allocation3], %s828
    %v830 = vld [vmem:[%s829] sm:$0xff]
    %v831 = vld [vmem:[%s829 + $0x8] sm:$0xff]
    %v832 = vld [vmem:[%s829 + $0x10] sm:$0xff]
    %v833 = vpack.c.bf16 %v826, %v826
    %834 = vmatprep.subr.bf16.mxu0 %v560
    %835 = vmatpush1.bf16.msra.mxu0 %v559
    %836 = vmatprep.subr.bf16.mxu0 %v557
    %837 = vmatpush1.bf16.msra.mxu0 %v556
    %838 = vmatprep.subr.bf16.mxu0 %v554
    %839 = vmatpush1.bf16.msra.mxu0 %v553
    %840 = vmatprep.subr.bf16.mxu0 %v551
    %841 = vmatpush1.bf16.msra.mxu0 %v550
    %842 = vmatprep.subr.bf16.mxu0 %v548
    %843 = vmatpush1.bf16.msra.mxu0 %v547
    %844 = vmatprep.subr.bf16.mxu0 %v545
    %845 = vmatpush1.bf16.msra.mxu0 %v544
    %846 = vmatprep.subr.bf16.mxu0 %v542
    %847 = vmatpush1.bf16.msra.mxu0 %v541
    %848 = vmatprep.subr.bf16.mxu0 %v539
    %849 = vmatpush1.bf16.msra.mxu0 %v538
    %850 = vmatprep.subr.bf16.mxu0 0
    %851 = vmatpush2.bf16.msra.mxu0 0
    %852 = vmatprep.subr.bf16.mxu0 0
    %853 = vmatpush2.bf16.msra.mxu0 0
    %854 = vmatprep.subr.bf16.mxu0 0
    %855 = vmatpush2.bf16.msra.mxu0 0
    %856 = vmatprep.subr.bf16.mxu0 0
    %857 = vmatpush2.bf16.msra.mxu0 0
    %858 = vmatprep.subr.bf16.mxu0 0
    %859 = vmatpush2.bf16.msra.mxu0 0
    %860 = vmatprep.subr.bf16.mxu0 0
    %861 = vmatpush2.bf16.msra.mxu0 0
    %862 = vmatprep.subr.bf16.mxu0 0
    %863 = vmatpush2.bf16.msra.mxu0 0
    %864 = vmatprep.subr.bf16.mxu0 0
    %865 = vmatpush2.bf16.msra.mxu0 0
    %866 = vmatprep.mubr.bf16.mxu0 0
    %867 = vmatmul.mubr.bf16.gmra.mxu0 %v833
    %v868 = vpop.f32.mrf.mxu0
    %v869 = vadd.f32 0.0, %v868
    %v870 = vpop.f32.mrf.mxu0
    %v871 = vadd.f32 0.0, %v870
    %v872 = vpop.f32.mrf.mxu0
    %v873 = vpop.f32.mrf.mxu0
    %874 = vdwg.mxu0
    %875 = vmatprep.subr.bf16.mxu0 0
    %876 = vmatpush1.bf16.msra.mxu0 %v561
    %877 = vmatprep.subr.bf16.mxu0 0
    %878 = vmatpush1.bf16.msra.mxu0 %v558
    %879 = vmatprep.subr.bf16.mxu0 0
    %880 = vmatpush1.bf16.msra.mxu0 %v555
    %881 = vmatprep.subr.bf16.mxu0 0
    %882 = vmatpush1.bf16.msra.mxu0 %v552
    %883 = vmatprep.subr.bf16.mxu0 0
    %884 = vmatpush1.bf16.msra.mxu0 %v549
    %885 = vmatprep.subr.bf16.mxu0 0
    %886 = vmatpush1.bf16.msra.mxu0 %v546
    %887 = vmatprep.subr.bf16.mxu0 0
    %888 = vmatpush1.bf16.msra.mxu0 %v543
    %889 = vmatprep.subr.bf16.mxu0 0
    %890 = vmatpush1.bf16.msra.mxu0 %v540
    %891 = vmatprep.subr.bf16.mxu0 0
    %892 = vmatpush2.bf16.msra.mxu0 0
    %893 = vmatprep.subr.bf16.mxu0 0
    %894 = vmatpush2.bf16.msra.mxu0 0
    %895 = vmatprep.subr.bf16.mxu0 0
    %896 = vmatpush2.bf16.msra.mxu0 0
    %897 = vmatprep.subr.bf16.mxu0 0
    %898 = vmatpush2.bf16.msra.mxu0 0
    %899 = vmatprep.subr.bf16.mxu0 0
    %900 = vmatpush2.bf16.msra.mxu0 0
    %901 = vmatprep.subr.bf16.mxu0 0
    %902 = vmatpush2.bf16.msra.mxu0 0
    %903 = vmatprep.subr.bf16.mxu0 0
    %904 = vmatpush2.bf16.msra.mxu0 0
    %905 = vmatprep.subr.bf16.mxu0 0
    %906 = vmatpush2.bf16.msra.mxu0 0
    %907 = vmatprep.mubr.bf16.mxu0 0
    %908 = vmatmul.mubr.bf16.gmra.mxu0 %v833
    %v909 = vpop.f32.mrf.mxu0
    %v910 = vadd.f32 0.0, %v909
    %v911 = vpop.f32.mrf.mxu0
    %v912 = vpop.f32.mrf.mxu0
    %v913 = vpop.f32.mrf.mxu0
    %914 = vdwg.mxu0
    %v915 = vadd.f32 %v830, %v869
    %v916 = vadd.f32 %v831, %v871
    %v917 = vpack.c.bf16 %v915, %v915
    %v918 = vpack.c.bf16 %v916, %v916
    %v919 = vxor.u32 %v917, 2147516416
    %v921 = vmul.bf16 %v919, 1069105081
    %v922 = vpow.bf16.pop %v921
    %v923 = vadd.bf16 %v922, 1065369472
    %v924 = vrcp.bf16.pop %v923
    %v925 = vmul.bf16 1065369472, %v924
    %v926 = vxor.u32 %v918, 2147516416
    %v928 = vmul.bf16 %v926, 1069105081
    %v929 = vpow.bf16.pop %v928
    %v930 = vadd.bf16 %v929, 1065369472
    %v931 = vrcp.bf16.pop %v930
    %v932 = vmul.bf16 1065369472, %v931
    %v933 = vadd.f32 %v910, %v441
    %v934 = vpack.c.bf16 %v933, %v933
    %v935 = vpack.c.bf16 %v832, %v832
    %v936 = vmul.bf16 %v925, %v934
    %v937 = vadd.bf16 %v935, %v936
    %v938 = vtanh.bf16.pop %v937
    %v939 = vunpack.c.l.bf16 %v938
    %v940 = vunpack.c.l.bf16 %v932
    %v941 = vsub.f32 %v826, %v939
    %v942 = vmul.f32 %v940, %v941
    %v943 = vadd.f32 %v939, %v942
    %v944 = vpack.c.bf16 %v943, %v943
    %s945 = smul.addr %s825, 4
    %s946 = scalar_lea.vmem %s6, %s945
    %947 = vst [vmem:[%s946] sm:$0xf] %v944
    %948 = vst [vmem:[#allocation2] sm:$0xff] %v943
    %s949 = sadd.s32 %s449, 3
    %v950 = vld [vmem:[#allocation2] sm:$0xff]
    %s951 = smul.u32 %s949, 3
    %s952 = smul.addr %s951, 8
    %s953 = scalar_lea.vmem [#allocation3], %s952
    %v954 = vld [vmem:[%s953] sm:$0xff]
    %v955 = vld [vmem:[%s953 + $0x8] sm:$0xff]
    %v956 = vld [vmem:[%s953 + $0x10] sm:$0xff]
    %v957 = vpack.c.bf16 %v950, %v950
    %958 = vmatprep.subr.bf16.mxu0 %v560
    %959 = vmatpush1.bf16.msra.mxu0 %v559
    %960 = vmatprep.subr.bf16.mxu0 %v557
    %961 = vmatpush1.bf16.msra.mxu0 %v556
    %962 = vmatprep.subr.bf16.mxu0 %v554
    %963 = vmatpush1.bf16.msra.mxu0 %v553
    %964 = vmatprep.subr.bf16.mxu0 %v551
    %965 = vmatpush1.bf16.msra.mxu0 %v550
    %966 = vmatprep.subr.bf16.mxu0 %v548
    %967 = vmatpush1.bf16.msra.mxu0 %v547
    %968 = vmatprep.subr.bf16.mxu0 %v545
    %969 = vmatpush1.bf16.msra.mxu0 %v544
    %970 = vmatprep.subr.bf16.mxu0 %v542
    %971 = vmatpush1.bf16.msra.mxu0 %v541
    %972 = vmatprep.subr.bf16.mxu0 %v539
    %973 = vmatpush1.bf16.msra.mxu0 %v538
    %974 = vmatprep.subr.bf16.mxu0 0
    %975 = vmatpush2.bf16.msra.mxu0 0
    %976 = vmatprep.subr.bf16.mxu0 0
    %977 = vmatpush2.bf16.msra.mxu0 0
    %978 = vmatprep.subr.bf16.mxu0 0
    %979 = vmatpush2.bf16.msra.mxu0 0
    %980 = vmatprep.subr.bf16.mxu0 0
    %981 = vmatpush2.bf16.msra.mxu0 0
    %982 = vmatprep.subr.bf16.mxu0 0
    %983 = vmatpush2.bf16.msra.mxu0 0
    %984 = vmatprep.subr.bf16.mxu0 0
    %985 = vmatpush2.bf16.msra.mxu0 0
    %986 = vmatprep.subr.bf16.mxu0 0
    %987 = vmatpush2.bf16.msra.mxu0 0
    %988 = vmatprep.subr.bf16.mxu0 0
    %989 = vmatpush2.bf16.msra.mxu0 0
    %990 = vmatprep.mubr.bf16.mxu0 0
    %991 = vmatmul.mubr.bf16.gmra.mxu0 %v957
    %v992 = vpop.f32.mrf.mxu0
    %v993 = vadd.f32 0.0, %v992
    %v994 = vpop.f32.mrf.mxu0
    %v995 = vadd.f32 0.0, %v994
    %v996 = vpop.f32.mrf.mxu0
    %v997 = vpop.f32.mrf.mxu0
    %998 = vdwg.mxu0
    %999 = vmatprep.subr.bf16.mxu0 0
    %1000 = vmatpush1.bf16.msra.mxu0 %v561
    %1001 = vmatprep.subr.bf16.mxu0 0
    %1002 = vmatpush1.bf16.msra.mxu0 %v558
    %1003 = vmatprep.subr.bf16.mxu0 0
    %1004 = vmatpush1.bf16.msra.mxu0 %v555
    %1005 = vmatprep.subr.bf16.mxu0 0
    %1006 = vmatpush1.bf16.msra.mxu0 %v552
    %1007 = vmatprep.subr.bf16.mxu0 0
    %1008 = vmatpush1.bf16.msra.mxu0 %v549
    %1009 = vmatprep.subr.bf16.mxu0 0
    %1010 = vmatpush1.bf16.msra.mxu0 %v546
    %1011 = vmatprep.subr.bf16.mxu0 0
    %1012 = vmatpush1.bf16.msra.mxu0 %v543
    %1013 = vmatprep.subr.bf16.mxu0 0
    %1014 = vmatpush1.bf16.msra.mxu0 %v540
    %1015 = vmatprep.subr.bf16.mxu0 0
    %1016 = vmatpush2.bf16.msra.mxu0 0
    %1017 = vmatprep.subr.bf16.mxu0 0
    %1018 = vmatpush2.bf16.msra.mxu0 0
    %1019 = vmatprep.subr.bf16.mxu0 0
    %1020 = vmatpush2.bf16.msra.mxu0 0
    %1021 = vmatprep.subr.bf16.mxu0 0
    %1022 = vmatpush2.bf16.msra.mxu0 0
    %1023 = vmatprep.subr.bf16.mxu0 0
    %1024 = vmatpush2.bf16.msra.mxu0 0
    %1025 = vmatprep.subr.bf16.mxu0 0
    %1026 = vmatpush2.bf16.msra.mxu0 0
    %1027 = vmatprep.subr.bf16.mxu0 0
    %1028 = vmatpush2.bf16.msra.mxu0 0
    %1029 = vmatprep.subr.bf16.mxu0 0
    %1030 = vmatpush2.bf16.msra.mxu0 0
    %1031 = vmatprep.mubr.bf16.mxu0 0
    %1032 = vmatmul.mubr.bf16.gmra.mxu0 %v957
    %v1033 = vpop.f32.mrf.mxu0
    %v1034 = vadd.f32 0.0, %v1033
    %v1035 = vpop.f32.mrf.mxu0
    %v1036 = vpop.f32.mrf.mxu0
    %v1037 = vpop.f32.mrf.mxu0
    %1038 = vdwg.mxu0
    %v1039 = vadd.f32 %v954, %v993
    %v1040 = vadd.f32 %v955, %v995
    %v1041 = vpack.c.bf16 %v1039, %v1039
    %v1042 = vpack.c.bf16 %v1040, %v1040
    %v1043 = vxor.u32 %v1041, 2147516416
    %v1045 = vmul.bf16 %v1043, 1069105081
    %v1046 = vpow.bf16.pop %v1045
    %v1047 = vadd.bf16 %v1046, 1065369472
    %v1048 = vrcp.bf16.pop %v1047
    %v1049 = vmul.bf16 1065369472, %v1048
    %v1050 = vxor.u32 %v1042, 2147516416
    %v1052 = vmul.bf16 %v1050, 1069105081
    %v1053 = vpow.bf16.pop %v1052
    %v1054 = vadd.bf16 %v1053, 1065369472
    %v1055 = vrcp.bf16.pop %v1054
    %v1056 = vmul.bf16 1065369472, %v1055
    %v1057 = vadd.f32 %v1034, %v441
    %v1058 = vpack.c.bf16 %v1057, %v1057
    %v1059 = vpack.c.bf16 %v956, %v956
    %v1060 = vmul.bf16 %v1049, %v1058
    %v1061 = vadd.bf16 %v1059, %v1060
    %v1062 = vtanh.bf16.pop %v1061
    %v1063 = vunpack.c.l.bf16 %v1062
    %v1064 = vunpack.c.l.bf16 %v1056
    %v1065 = vsub.f32 %v950, %v1063
    %v1066 = vmul.f32 %v1064, %v1065
    %v1067 = vadd.f32 %v1063, %v1066
    %v1068 = vpack.c.bf16 %v1067, %v1067
    %s1069 = smul.addr %s949, 4
    %s1070 = scalar_lea.vmem %s6, %s1069
    %1071 = vst [vmem:[%s1070] sm:$0xf] %v1068
    %1072 = vst [vmem:[#allocation2] sm:$0xff] %v1067
  $region34: #{_forward.3} parent=0 // loop_footer
    %s448 = sadd.s32 1, %s444
  $region35: #{_forward.3} parent=0 // loop_footer_branch
    %443 = sbr.rel target = $region31
  $region36: #{_forward.3} parent=0 // loop_exit
    _
  // Predicated region
  $region37: #{_forward.3} parent=0 // pred_check
    %p1073 = pneg %p27
  $region38: #{_forward.3} parent=0 // pred_check_branch
    %1075 = sbr.rel (%p1073) target = $region40
  $region39: #{_forward.3} parent=0 // pred_region
    %v1076 = vld [vmem:[#allocation2] sm:$0xff]
    %1077 = vst [vmem:[%s7] sm:$0xff] %v1076
  $region40: #{_forward.3} parent=0 // pred_fallthru
    _
  // Predicated region
  $region41: #{_forward.3} parent=0 // pred_check
    _
  $region42: #{_forward.3} parent=0 // pred_check_branch
    %1079 = sbr.rel (0) target = $region44
  $region43: #{_forward.3} parent=0 // pred_region
    _
  $region44: #{_forward.3} parent=0 // pred_fallthru
    _
  // Predicated region
  $region45: #{_forward.3} parent=0 // pred_check
    _
  $region46: #{_forward.3} parent=0 // pred_check_branch
    %1081 = sbr.rel (0) target = $region48
  $region47: #{_forward.3} parent=0 // pred_region
    _
  $region48: #{_forward.3} parent=0 // pred_fallthru
    _
  // Predicated region
  $region49: #{_forward.3} parent=0 // pred_check
    _
  $region50: #{_forward.3} parent=0 // pred_check_branch
    %1083 = sbr.rel (0) target = $region52
  $region51: #{_forward.3} parent=0 // pred_region
    _
  $region52: #{_forward.3} parent=0 // pred_fallthru
    _
  // Predicated region
  $region53: #{_forward.3} parent=0 // pred_check
    _
  $region54: #{_forward.3} parent=0 // pred_check_branch
    %1085 = sbr.rel (0) target = $region56
  $region55: #{_forward.3} parent=0 // pred_region
    _
  $region56: #{_forward.3} parent=0 // pred_fallthru
    _

</llo_original>
